<compile_context>
chip_gen: v5e
topology: v5e:2x2
jax: 0.10.0
libtpu: 0.0.40
codegen_flags: <defaults>
</compile_context>

<pallas_src>
import functools

import jax
import jax.numpy as jnp
from jax.experimental import pallas as pl
from jax.experimental.pallas import tpu as pltpu


def _dwconv_kernel(x_ref, w_ref, b_ref, m_ref, o_ref, *, W):
    # x_ref : (1, N, TC)  input block: spatial (N = H*W) on sublanes, channels on lanes
    # w_ref : (9, TC)     depthwise taps, row index = kh*3 + kw
    # b_ref : (1, TC)     bias
    # m_ref : (N, 4)      0/1 border masks: [col>0, col<W-1, row>0, row<H-1]
    # o_ref : (1, N, TC)
    N = o_ref.shape[1]

    # Hoisted loads + single upcast (no per-tap casts / re-loads).
    x = x_ref[0].astype(jnp.float32)          # (N, TC)
    w = w_ref[...].astype(jnp.float32)        # (9, TC)
    b = b_ref[...].astype(jnp.float32)        # (1, TC)
    m = m_ref[...]                            # (N, 4) f32
    cm_l = m[:, 0:1]                          # col > 0
    cm_r = m[:, 1:2]                          # col < W-1
    rm_t = m[:, 2:3]                          # row > 0
    rm_b = m[:, 3:4]                          # row < H-1

    # Column-shifted, column-masked planes: y_dw[n] = x[(n + dw) % N] * colmask.
    # Wrapped / row-crossing elements land exactly on masked positions, so the
    # cyclic roll is harmless.  pltpu.roll matches jnp.roll semantics
    # (result[i] = x[(i - shift) % N]).
    y_m1 = pltpu.roll(x, 1, axis=0) * cm_l        # dw = -1
    y_0 = x                                       # dw =  0 (never out of range)
    y_p1 = pltpu.roll(x, N - 1, axis=0) * cm_r    # dw = +1

    # Bias seeds the accumulator (saves a full-tile add at the end).
    acc = jnp.broadcast_to(b, x.shape)            # (N, TC)

    # Per row-offset: weighted sum of the column planes (per-channel weights,
    # constant along sublanes), one roll by dh*W, one row-mask multiply.
    for dh in (-1, 0, 1):
        k = (dh + 1) * 3
        z = (y_m1 * w[k:k + 1, :]
             + y_0 * w[k + 1:k + 2, :]
             + y_p1 * w[k + 2:k + 3, :])
        if dh != 0:
            z = pltpu.roll(z, (-dh * W) % N, axis=0)
            z = z * (rm_t if dh == -1 else rm_b)
        acc = acc + z

    o_ref[0] = acc.astype(o_ref.dtype)


def _vmem_capacity_bytes():
    try:
        return int(pltpu.get_tpu_info().vmem_capacity_bytes)
    except Exception:
        return 64 * 1024 * 1024          # conservative (v7x per-core VMEM)


def _channel_tile(C, N, max_block_bytes):
    """Channel tile: C itself when C < 128 / odd; otherwise the largest
    multiple-of-128 divisor of C whose (N, TC) f32 plane fits max_block_bytes."""
    if C % 128 != 0:
        return C
    cap = max(128, (max_block_bytes // max(1, N * 4)) // 128 * 128)
    tc = min(C, cap)
    while C % tc != 0:
        tc -= 128
    return tc


def _vmem_limit_bytes(N, TC, itemsize, vmem_cap):
    """Derived scoped-VMEM request: double-buffered in/out blocks + live f32
    working planes (x, 3 column planes, z, acc, roll temps) + headroom."""
    blk_io = N * TC * itemsize
    blk_f32 = N * TC * 4
    need = 4 * blk_io + 8 * blk_f32 + 4 * 1024 * 1024
    return int(min(max(need, 32 * 1024 * 1024), int(vmem_cap * 0.9)))


def dwconv_pallas(x, weight, bias, H, W):
    """Depthwise 3x3 conv in native (B, N, C) layout.

    x: (B, N, C) with N = H*W, weight: (3, 3, C), bias: (C,).  Returns (B, N, C).
    """
    B, N, C = x.shape
    assert N == H * W

    w9 = weight.reshape(9, C)              # row = kh*3 + kw, lane axis = channel
    b_row = bias.reshape(1, C)

    # Tiny per-position border masks (fused into the multiply chain in-kernel).
    n_idx = jnp.arange(N, dtype=jnp.int32)
    col = n_idx % W
    row = n_idx // W
    masks = jnp.stack(
        [col > 0, col < W - 1, row > 0, row < H - 1], axis=1
    ).astype(jnp.float32)                  # (N, 4)

    vmem_cap = _vmem_capacity_bytes()
    # Bigger tiles on 128 MiB parts (v5e/v6e), ~2 MiB planes on 64 MiB (v7x).
    max_blk = 6 * 1024 * 1024 if vmem_cap >= 100 * 1024 * 1024 else 2 * 1024 * 1024
    TC = _channel_tile(C, N, max_blk)
    if B * (C // TC) < 2 and C % 256 == 0:
        TC //= 2                           # degenerate grid: feed both v7x TCs

    grid = (C // TC, B)   # channel tiles outer -> per-tile weights/bias stay put
    kernel = functools.partial(_dwconv_kernel, W=W)

    out = pl.pallas_call(
        kernel,
        out_shape=jax.ShapeDtypeStruct((B, N, C), x.dtype),
        grid_spec=pltpu.PrefetchScalarGridSpec(
            num_scalar_prefetch=0,
            grid=grid,
            in_specs=[
                pl.BlockSpec((1, N, TC), lambda c, b: (b, 0, c)),
                pl.BlockSpec((9, TC), lambda c, b: (0, c)),
                pl.BlockSpec((1, TC), lambda c, b: (0, c)),
                pl.BlockSpec((N, 4), lambda c, b: (0, 0)),
            ],
            out_specs=pl.BlockSpec((1, N, TC), lambda c, b: (b, 0, c)),
        ),
        compiler_params=pltpu.CompilerParams(
            dimension_semantics=("parallel", "parallel"),
            vmem_limit_bytes=_vmem_limit_bytes(N, TC, x.dtype.itemsize, vmem_cap),
        ),
    )(x, w9, b_row, masks)

    return out


def _reference(x, weight, bias, H, W):
    """Reference via lax depthwise conv (mirrors the PyTorch NCHW path)."""
    B, N, C = x.shape
    x_nchw = jnp.transpose(x.reshape(B, H, W, C), (0, 3, 1, 2))      # (B, C, H, W)
    # PyTorch depthwise weight layout: (C, 1, 3, 3) == (out, in/groups, kh, kw)
    w_oihw = jnp.transpose(weight, (2, 0, 1))[:, None, :, :]          # (C, 1, 3, 3)
    y = jax.lax.conv_general_dilated(
        x_nchw, w_oihw, window_strides=(1, 1), padding=((1, 1), (1, 1)),
        dimension_numbers=("NCHW", "OIHW", "NCHW"), feature_group_count=C)
    y = y + bias.reshape(1, C, 1, 1)
    return jnp.transpose(y.reshape(B, C, N), (0, 2, 1))               # (B, N, C)


if __name__ == "__main__":
    key = jax.random.PRNGKey(0)

    def make_case(k, B, C, H, W):
        kx, kw, kb = jax.random.split(k, 3)
        N = H * W
        x = jax.random.normal(kx, (B, N, C), dtype=jnp.float32)
        # Deterministic synthetic params (matches nn.Conv2d(dim, dim, 3, groups=dim)):
        fan_in = 1 * 3 * 3
        bound = 1.0 / (fan_in ** 0.5)
        weight = jax.random.uniform(kw, (3, 3, C), jnp.float32, -bound, bound)
        bias = jax.random.uniform(kb, (C,), jnp.float32, -bound, bound)
        return x, weight, bias

    k0, k1 = jax.random.split(key)
    cases = [
        (k0, 2, 128, 16, 16),   # lane-dense native layout (C on lanes)
        (k1, 2, 8, 8, 8),       # tiny-C fallback path (full-C block)
    ]
    for kk, B, C, H, W in cases:
        x, weight, bias = make_case(kk, B, C, H, W)
        y = dwconv_pallas(x, weight, bias, H, W)
        jax.block_until_ready(y)
        y_ref = _reference(x, weight, bias, H, W)
        assert y.shape == x.shape
        assert jnp.allclose(y, y_ref, atol=1e-4, rtol=1e-4), (
            f"mismatch vs reference for B={B} C={C} H={H} W={W}")

    print("KERNEL_OK")
</pallas_src>

<mosaic_0001>
module attributes {stable_mosaic.version = 11 : i64} {
  func.func @_dwconv_kernel(%arg0: i32, %arg1: i32, %arg2: memref<1x256x128xf32, #tpu.memory_space<vmem>>, %arg3: memref<9x128xf32, #tpu.memory_space<vmem>>, %arg4: memref<1x128xf32, #tpu.memory_space<vmem>>, %arg5: memref<256x4xf32, #tpu.memory_space<vmem>>, %arg6: memref<1x256x128xf32, #tpu.memory_space<vmem>>) attributes {dimension_semantics = [#tpu.dimension_semantics<parallel>, #tpu.dimension_semantics<parallel>], iteration_bounds = array<i64: 1, 2>, scalar_prefetch = 0 : i64, scratch_operands = 0 : i64, tpu.core_type = #tpu.core_type<tc>, window_params = [{transform_indices = @transform_0, window_bounds = array<i64: 1, 256, 128>}, {transform_indices = @transform_1, window_bounds = array<i64: 9, 128>}, {transform_indices = @transform_2, window_bounds = array<i64: 1, 128>}, {pipeline_mode = #tpu.pipeline_mode<synchronous>, transform_indices = @transform_3, window_bounds = array<i64: 256, 4>}, {transform_indices = @transform_4, window_bounds = array<i64: 1, 256, 128>}]} {
    %c0 = arith.constant 0 : index
    %c0_0 = arith.constant 0 : index
    %c0_1 = arith.constant 0 : index
    %0 = vector.load %arg2[%c0, %c0_0, %c0_1] : memref<1x256x128xf32, #tpu.memory_space<vmem>>, vector<1x256x128xf32>
    %1 = vector.shape_cast %0 : vector<1x256x128xf32> to vector<256x128xf32>
    %c0_2 = arith.constant 0 : index
    %c0_3 = arith.constant 0 : index
    %2 = vector.load %arg3[%c0_2, %c0_3] : memref<9x128xf32, #tpu.memory_space<vmem>>, vector<9x128xf32>
    %c0_4 = arith.constant 0 : index
    %c0_5 = arith.constant 0 : index
    %3 = vector.load %arg4[%c0_4, %c0_5] : memref<1x128xf32, #tpu.memory_space<vmem>>, vector<1x128xf32>
    %c0_6 = arith.constant 0 : index
    %c0_7 = arith.constant 0 : index
    %4 = vector.load %arg5[%c0_6, %c0_7] : memref<256x4xf32, #tpu.memory_space<vmem>>, vector<256x4xf32>
    %5 = vector.extract_strided_slice %4 {offsets = [0, 0], sizes = [256, 1], strides = [1, 1]} : vector<256x4xf32> to vector<256x1xf32>
    %6 = vector.extract_strided_slice %4 {offsets = [0, 1], sizes = [256, 1], strides = [1, 1]} : vector<256x4xf32> to vector<256x1xf32>
    %7 = vector.extract_strided_slice %4 {offsets = [0, 2], sizes = [256, 1], strides = [1, 1]} : vector<256x4xf32> to vector<256x1xf32>
    %8 = vector.extract_strided_slice %4 {offsets = [0, 3], sizes = [256, 1], strides = [1, 1]} : vector<256x4xf32> to vector<256x1xf32>
    %c1_i32 = arith.constant 1 : i32
    %9 = tpu.dynamic_rotate %1 by %c1_i32 dim 0 : vector<256x128xf32>, i32 -> vector<256x128xf32>
    %10 = vector.broadcast %5 : vector<256x1xf32> to vector<256x128xf32>
    %11 = arith.mulf %9, %10 : vector<256x128xf32>
    %c255_i32 = arith.constant 255 : i32
    %12 = tpu.dynamic_rotate %1 by %c255_i32 dim 0 : vector<256x128xf32>, i32 -> vector<256x128xf32>
    %13 = vector.broadcast %6 : vector<256x1xf32> to vector<256x128xf32>
    %14 = arith.mulf %12, %13 : vector<256x128xf32>
    %15 = vector.shape_cast %3 : vector<1x128xf32> to vector<1x128xf32>
    %16 = vector.broadcast %15 : vector<1x128xf32> to vector<256x128xf32>
    %17 = vector.extract_strided_slice %2 {offsets = [0, 0], sizes = [1, 128], strides = [1, 1]} : vector<9x128xf32> to vector<1x128xf32>
    %18 = vector.broadcast %17 : vector<1x128xf32> to vector<256x128xf32>
    %19 = arith.mulf %11, %18 : vector<256x128xf32>
    %20 = vector.extract_strided_slice %2 {offsets = [1, 0], sizes = [1, 128], strides = [1, 1]} : vector<9x128xf32> to vector<1x128xf32>
    %21 = vector.broadcast %20 : vector<1x128xf32> to vector<256x128xf32>
    %22 = arith.mulf %1, %21 : vector<256x128xf32>
    %23 = arith.addf %19, %22 : vector<256x128xf32>
    %24 = vector.extract_strided_slice %2 {offsets = [2, 0], sizes = [1, 128], strides = [1, 1]} : vector<9x128xf32> to vector<1x128xf32>
    %25 = vector.broadcast %24 : vector<1x128xf32> to vector<256x128xf32>
    %26 = arith.mulf %14, %25 : vector<256x128xf32>
    %27 = arith.addf %23, %26 : vector<256x128xf32>
    %c16_i32 = arith.constant 16 : i32
    %28 = tpu.dynamic_rotate %27 by %c16_i32 dim 0 : vector<256x128xf32>, i32 -> vector<256x128xf32>
    %29 = vector.broadcast %7 : vector<256x1xf32> to vector<256x128xf32>
    %30 = arith.mulf %28, %29 : vector<256x128xf32>
    %31 = arith.addf %16, %30 : vector<256x128xf32>
    %32 = vector.extract_strided_slice %2 {offsets = [3, 0], sizes = [1, 128], strides = [1, 1]} : vector<9x128xf32> to vector<1x128xf32>
    %33 = vector.broadcast %32 : vector<1x128xf32> to vector<256x128xf32>
    %34 = arith.mulf %11, %33 : vector<256x128xf32>
    %35 = vector.extract_strided_slice %2 {offsets = [4, 0], sizes = [1, 128], strides = [1, 1]} : vector<9x128xf32> to vector<1x128xf32>
    %36 = vector.broadcast %35 : vector<1x128xf32> to vector<256x128xf32>
    %37 = arith.mulf %1, %36 : vector<256x128xf32>
    %38 = arith.addf %34, %37 : vector<256x128xf32>
    %39 = vector.extract_strided_slice %2 {offsets = [5, 0], sizes = [1, 128], strides = [1, 1]} : vector<9x128xf32> to vector<1x128xf32>
    %40 = vector.broadcast %39 : vector<1x128xf32> to vector<256x128xf32>
    %41 = arith.mulf %14, %40 : vector<256x128xf32>
    %42 = arith.addf %38, %41 : vector<256x128xf32>
    %43 = arith.addf %31, %42 : vector<256x128xf32>
    %44 = vector.extract_strided_slice %2 {offsets = [6, 0], sizes = [1, 128], strides = [1, 1]} : vector<9x128xf32> to vector<1x128xf32>
    %45 = vector.broadcast %44 : vector<1x128xf32> to vector<256x128xf32>
    %46 = arith.mulf %11, %45 : vector<256x128xf32>
    %47 = vector.extract_strided_slice %2 {offsets = [7, 0], sizes = [1, 128], strides = [1, 1]} : vector<9x128xf32> to vector<1x128xf32>
    %48 = vector.broadcast %47 : vector<1x128xf32> to vector<256x128xf32>
    %49 = arith.mulf %1, %48 : vector<256x128xf32>
    %50 = arith.addf %46, %49 : vector<256x128xf32>
    %51 = vector.extract_strided_slice %2 {offsets = [8, 0], sizes = [1, 128], strides = [1, 1]} : vector<9x128xf32> to vector<1x128xf32>
    %52 = vector.broadcast %51 : vector<1x128xf32> to vector<256x128xf32>
    %53 = arith.mulf %14, %52 : vector<256x128xf32>
    %54 = arith.addf %50, %53 : vector<256x128xf32>
    %c240_i32 = arith.constant 240 : i32
    %55 = tpu.dynamic_rotate %54 by %c240_i32 dim 0 : vector<256x128xf32>, i32 -> vector<256x128xf32>
    %56 = vector.broadcast %8 : vector<256x1xf32> to vector<256x128xf32>
    %57 = arith.mulf %55, %56 : vector<256x128xf32>
    %58 = arith.addf %43, %57 : vector<256x128xf32>
    %c0_8 = arith.constant 0 : index
    %c0_9 = arith.constant 0 : index
    %c0_10 = arith.constant 0 : index
    %59 = vector.load %arg6[%c0_8, %c0_9, %c0_10] : memref<1x256x128xf32, #tpu.memory_space<vmem>>, vector<1x256x128xf32>
    %60 = vector.shape_cast %59 : vector<1x256x128xf32> to vector<256x128xf32>
    %61 = vector.shape_cast %58 : vector<256x128xf32> to vector<1x256x128xf32>
    tpu.vector_store %arg6[%c0_8, %c0_9, %c0_10], %61 {strides = array<i32>} : memref<1x256x128xf32, #tpu.memory_space<vmem>>, vector<1x256x128xf32>,
    return
  }
  func.func @transform_0(%arg0: i32, %arg1: i32) -> (i32, i32, i32) {
    %c0_i32 = arith.constant 0 : i32
    %c0_i32_0 = arith.constant 0 : i32
    return %arg1, %c0_i32, %arg0 : i32, i32, i32
  }
  func.func @transform_1(%arg0: i32, %arg1: i32) -> (i32, i32) {
    %c0_i32 = arith.constant 0 : i32
    %c0_i32_0 = arith.constant 0 : i32
    return %c0_i32, %arg0 : i32, i32
  }
  func.func @transform_2(%arg0: i32, %arg1: i32) -> (i32, i32) {
    %c0_i32 = arith.constant 0 : i32
    %c0_i32_0 = arith.constant 0 : i32
    return %c0_i32, %arg0 : i32, i32
  }
  func.func @transform_3(%arg0: i32, %arg1: i32) -> (i32, i32) {
    %c0_i32 = arith.constant 0 : i32
    %c0_i32_0 = arith.constant 0 : i32
    %c0_i32_1 = arith.constant 0 : i32
    return %c0_i32, %c0_i32_0 : i32, i32
  }
  func.func @transform_4(%arg0: i32, %arg1: i32) -> (i32, i32, i32) {
    %c0_i32 = arith.constant 0 : i32
    %c0_i32_0 = arith.constant 0 : i32
    return %arg1, %c0_i32, %arg0 : i32, i32, i32
  }
}

</mosaic_0001>

<llo_original>
// kernel: tpu_custom_call.1
$region0: #{tpu_custom_call.1}
  #allocation0 [shape = 'u32[]', space=smem, size = 0x4, offset = 0x4, fixed_abs, tag = 'smem constant byte address 0x4 - core index']
  #allocation1 [shape = 'u32[72,128]{1,0:T(1,128)}', space=vmem, size = 0x9000, scoped, tag = 'internal scratch']
  %s0 = inlined_call_operand.hbm [shape: f32[2,256,128], index: 0, kind: input, shape index: {}]
  %s1 = inlined_call_operand.vmem [shape: f32[9,128], index: 1, kind: input, shape index: {}]
  %s2 = inlined_call_operand.vmem [shape: f32[1,128], index: 2, kind: input, shape index: {}]
  %s3 = inlined_call_operand.vmem [shape: f32[256,4], index: 3, kind: input, shape index: {}]
  %s4 = inlined_call_operand.hbm [shape: f32[2,256,128], index: 4, kind: output, shape index: {}]
  %s5 = sld [smem:[#allocation0]]
  $region53: #{tpu_custom_call.1} parent=0
    _
  %s7 = ssub.s32 1, %s5
  %s8 = scalar_select 0, %s7, %s5
  $region1: #{tpu_custom_call.1} parent=0
    #allocation2 [shape = 'u8[262144]{0}', space=vmem, size = 0x40000, scoped, tag = 'input window, operand 0']
    #allocation3 [shape = 's32[2]{0}', space=sflag, size = 0x8, scoped, tag = 'scoped memory for tpu_custom_call.1']
    #allocation4 [shape = 's32[2]{0}', space=sflag, size = 0x8, scoped, tag = 'scoped memory for tpu_custom_call.1']
    #allocation5 [shape = 'u8[262144]{0}', space=vmem, size = 0x40000, scoped, tag = 'output window, operand 0']
    %9 = vsyncpa [#allocation3], 0
    %s10 = scalar_lea.sflag [#allocation3], 1
    %11 = vsyncpa %s10, 0
    %12 = vsyncpa [#allocation4], 0
    %s13 = scalar_lea.sflag [#allocation4], 1
    %14 = vsyncpa %s13, 0
    loop: start=0, step=1, limit=4
    $region2: #{tpu_custom_call.1} parent=1 // loop_pre_header
      _
    $region3: #{tpu_custom_call.1} parent=1 // loop_header
      %s16 = sphi 0, %s20
      %p17 = scmp.ge.s32.totalorder %s16, 4
      %s23 = sphi 0, %s35
      %s24 = sphi 0, %s31
      %s25 = sphi 0, %s23
      %s26 = sphi 0, %s24
      %s27 = sphi 0, %s25
      %s28 = sphi 0, %s26
      %s40 = sphi 0, %s42
      %s43 = sphi 0, %s40
      %s44 = sphi 0, %s43
      %s60 = sphi 0, %s44
      %s66 = sphi 0, %s68
      %s69 = sphi 0, %s66
      %s70 = sphi 0, %s69
      %s86 = sphi 0, %s70
      %s92 = sphi 0, %s94
      %s95 = sphi 0, %s92
      %s96 = sphi 0, %s95
      %s112 = sphi 0, %s96
      %s116 = sphi 0, %s116
      %s118 = sphi 0, %s116
      %s119 = sphi 0, %s118
      %s133 = sphi 0, %s119
      %s141 = sphi 0, %s143
      %s144 = sphi 0, %s141
      %s145 = sphi 0, %s144
      %s161 = sphi 0, %s145
    $region4: #{tpu_custom_call.1} parent=1 // loop_header_branch
      %19 = sbr.rel (%p17) target = $region8
    $region5: #{tpu_custom_call.1} parent=1 // loop_body
      %s21 = ssub.s32 %s16, 1
      %s22 = ssub.s32 %s16, 2
      %s29 = sadd.s32 1, %s24
      %p30 = scmp.ge.s32.totalorder %s29, 2
      %s31 = scalar_select %p30, 0, %s29
      %s32 = sadd.s32 1, %s23
      %s33 = scalar_select %p30, %s32, %s23
      %p34 = scmp.ge.s32.totalorder %s33, 1
      %s35 = scalar_select %p34, 0, %s33
      %s36 = ssub.s32 %s24, %s31
      %s37 = ssub.s32 %s23, %s35
      %s38 = sor.u32 %s36, %s37
      %p39 = scmp.eq.s32.totalorder %s38, 0
      %s41 = sadd.s32 %s40, 1
      %s42 = scalar_select %p39, %s40, %s41
      %p45 = pneg %p39
      %p46 = scmp.eq.s32.totalorder %s16, 1
      %p47 = por %p45, %p46
      %p48 = scmp.ne.s32.totalorder %s40, %s43
      %p49 = scmp.eq.s32.totalorder %s16, 0
      %p50 = por %p48, %p49
      %p51 = scmp.ne.s32.totalorder %s40, %s43
      %p52 = scmp.eq.s32.totalorder %s21, 1
      %p53 = por %p51, %p52
      %p54 = scmp.ne.s32.totalorder %s43, %s44
      %p55 = scmp.eq.s32.totalorder %s21, 0
      %p56 = por %p54, %p55
      %p57 = scmp.ne.s32.totalorder %s43, %s44
      %p58 = scmp.eq.s32.totalorder %s22, 1
      %p59 = por %p57, %p58
      %p61 = scmp.ne.s32.totalorder %s44, %s60
      %p62 = scmp.eq.s32.totalorder %s22, 0
      %p63 = por %p61, %p62
      %s64 = ssub.s32 %s23, %s35
      %p65 = scmp.eq.s32.totalorder %s64, 0
      %s67 = sadd.s32 %s66, 1
      %s68 = scalar_select %p65, %s66, %s67
      %p71 = pneg %p65
      %p72 = scmp.eq.s32.totalorder %s16, 1
      %p73 = por %p71, %p72
      %p74 = scmp.ne.s32.totalorder %s66, %s69
      %p75 = scmp.eq.s32.totalorder %s16, 0
      %p76 = por %p74, %p75
      %p77 = scmp.ne.s32.totalorder %s66, %s69
      %p78 = scmp.eq.s32.totalorder %s21, 1
      %p79 = por %p77, %p78
      %p80 = scmp.ne.s32.totalorder %s69, %s70
      %p81 = scmp.eq.s32.totalorder %s21, 0
      %p82 = por %p80, %p81
      %p83 = scmp.ne.s32.totalorder %s69, %s70
      %p84 = scmp.eq.s32.totalorder %s22, 1
      %p85 = por %p83, %p84
      %p87 = scmp.ne.s32.totalorder %s70, %s86
      %p88 = scmp.eq.s32.totalorder %s22, 0
      %p89 = por %p87, %p88
      %s90 = ssub.s32 %s23, %s35
      %p91 = scmp.eq.s32.totalorder %s90, 0
      %s93 = sadd.s32 %s92, 1
      %s94 = scalar_select %p91, %s92, %s93
      %p97 = pneg %p91
      %p98 = scmp.eq.s32.totalorder %s16, 1
      %p99 = por %p97, %p98
      %p100 = scmp.ne.s32.totalorder %s92, %s95
      %p101 = scmp.eq.s32.totalorder %s16, 0
      %p102 = por %p100, %p101
      %p103 = scmp.ne.s32.totalorder %s92, %s95
      %p104 = scmp.eq.s32.totalorder %s21, 1
      %p105 = por %p103, %p104
      %p106 = scmp.ne.s32.totalorder %s95, %s96
      %p107 = scmp.eq.s32.totalorder %s21, 0
      %p108 = por %p106, %p107
      %p109 = scmp.ne.s32.totalorder %s95, %s96
      %p110 = scmp.eq.s32.totalorder %s22, 1
      %p111 = por %p109, %p110
      %p113 = scmp.ne.s32.totalorder %s96, %s112
      %p114 = scmp.eq.s32.totalorder %s22, 0
      %p115 = por %p113, %p114
      %s117 = sadd.s32 %s116, 1
      %p120 = scmp.eq.s32.totalorder %s16, 1
      %p121 = scmp.ne.s32.totalorder %s116, %s118
      %p122 = scmp.eq.s32.totalorder %s16, 0
      %p123 = por %p121, %p122
      %p124 = scmp.ne.s32.totalorder %s116, %s118
      %p125 = scmp.eq.s32.totalorder %s21, 1
      %p126 = por %p124, %p125
      %p127 = scmp.ne.s32.totalorder %s118, %s119
      %p128 = scmp.eq.s32.totalorder %s21, 0
      %p129 = por %p127, %p128
      %p130 = scmp.ne.s32.totalorder %s118, %s119
      %p131 = scmp.eq.s32.totalorder %s22, 1
      %p132 = por %p130, %p131
      %p134 = scmp.ne.s32.totalorder %s119, %s133
      %p135 = scmp.eq.s32.totalorder %s22, 0
      %p136 = por %p134, %p135
      %s137 = ssub.s32 %s24, %s31
      %s138 = ssub.s32 %s23, %s35
      %s139 = sor.u32 %s137, %s138
      %p140 = scmp.eq.s32.totalorder %s139, 0
      %s142 = sadd.s32 %s141, 1
      %s143 = scalar_select %p140, %s141, %s142
      %p146 = pneg %p140
      %p147 = scmp.eq.s32.totalorder %s16, 1
      %p148 = por %p146, %p147
      %p149 = scmp.ne.s32.totalorder %s141, %s144
      %p150 = scmp.eq.s32.totalorder %s16, 0
      %p151 = por %p149, %p150
      %p152 = scmp.ne.s32.totalorder %s141, %s144
      %p153 = scmp.eq.s32.totalorder %s21, 1
      %p154 = por %p152, %p153
      %p155 = scmp.ne.s32.totalorder %s144, %s145
      %p156 = scmp.eq.s32.totalorder %s21, 0
      %p157 = por %p155, %p156
      %p158 = scmp.ne.s32.totalorder %s144, %s145
      %p159 = scmp.eq.s32.totalorder %s22, 1
      %p160 = por %p158, %p159
      %p162 = scmp.ne.s32.totalorder %s145, %s161
      %p163 = scmp.eq.s32.totalorder %s22, 0
      %p164 = por %p162, %p163
      %p165 = scmp.le.s32.totalorder 1, %s16
      %p166 = scmp.lt.s32.totalorder %s16, 3
      %p167 = pnand %p165, %p166
      %p168 = pneg %p167
      // Predicated region
      $region9: #{tpu_custom_call.1} parent=5 // pred_check
        _
      $region10: #{tpu_custom_call.1} parent=5 // pred_check_branch
        %170 = sbr.rel (%p167) target = $region12
      $region11: #{tpu_custom_call.1} parent=5 // pred_region
        %s171 = ssub.s32 %s16, 1
        // Predicated region
        $region13: #{tpu_custom_call.1} parent=11 // pred_check
          %p172 = pneg %p82
        $region14: #{tpu_custom_call.1} parent=11 // pred_check_branch
          %174 = sbr.rel (%p172) target = $region16
        $region15: #{tpu_custom_call.1} parent=11 // pred_region
          %p175 = scmp.lt.s32.totalorder %s25, 0
          %s176 = scalar_select %p175, %s25, 0
          %s177 = smul.addr %s176, 8
          %s178 = scalar_lea.vmem %s1, %s177
        $region16: #{tpu_custom_call.1} parent=11 // pred_fallthru
          _
        // Predicated region
        $region17: #{tpu_custom_call.1} parent=11 // pred_check
          %p179 = pneg %p108
        $region18: #{tpu_custom_call.1} parent=11 // pred_check_branch
          %181 = sbr.rel (%p179) target = $region20
        $region19: #{tpu_custom_call.1} parent=11 // pred_region
          %p182 = scmp.lt.s32.totalorder %s25, 0
          %s183 = scalar_select %p182, %s25, 0
          %s184 = scalar_lea.vmem %s2, %s183
        $region20: #{tpu_custom_call.1} parent=11 // pred_fallthru
          _
        // Predicated region
        $region21: #{tpu_custom_call.1} parent=11 // pred_check
          %p185 = pneg %p129
        $region22: #{tpu_custom_call.1} parent=11 // pred_check_branch
          %187 = sbr.rel (%p185) target = $region24
        $region23: #{tpu_custom_call.1} parent=11 // pred_region
          _
        $region24: #{tpu_custom_call.1} parent=11 // pred_fallthru
          _
      $region12: #{tpu_custom_call.1} parent=5 // pred_fallthru
        _
      %p188 = scmp.lt.s32.totalorder %s16, 2
      // Predicated region
      $region25: #{tpu_custom_call.1} parent=5 // pred_check
        %p189 = pneg %p188
      $region26: #{tpu_custom_call.1} parent=5 // pred_check_branch
        %191 = sbr.rel (%p189) target = $region28
      $region27: #{tpu_custom_call.1} parent=5 // pred_region
        // Predicated region
        $region29: #{tpu_custom_call.1} parent=27 // pred_check
          %p192 = pneg %p50
        $region30: #{tpu_custom_call.1} parent=27 // pred_check_branch
          %194 = sbr.rel (%p192) target = $region32
        $region31: #{tpu_custom_call.1} parent=27 // pred_region
          %s195 = sand.u32 %s40, 1
          %s196 = scalar_lea.sflag [#allocation3], %s195
          %s197 = sand.u32 %s40, 1
          %s198 = smul.addr %s197, 256
          %s199 = scalar_lea.vmem [#allocation2], %s198
          %201 = vsyncadd %s196, 0
          %s202 = smul.addr %s24, 32
          %s203 = sadd.s32 %s23, %s202
          %s204 = smul.addr %s203, 8
          %s205 = scalar_lea.hbm %s0, %s204
          %s206 = sshll.u32 %s205, 4
          %s207 = int_to_ptr.hbm [resolvable:$true] %s206
          %s208 = sshll.u32 %s199, 4
          %s209 = int_to_ptr.vmem [resolvable:$true] %s208
          %214 = dma.hbm_to_vmem [thread:$0]  %s207, 4096, %s209, %s196, 128, 128, 8
        $region32: #{tpu_custom_call.1} parent=27 // pred_fallthru
          _
      $region28: #{tpu_custom_call.1} parent=5 // pred_fallthru
        _
      %p215 = scmp.le.s32.totalorder 1, %s16
      %p216 = scmp.lt.s32.totalorder %s16, 3
      %p217 = pnand %p215, %p216
      %p218 = pneg %p217
      // Predicated region
      $region33: #{tpu_custom_call.1} parent=5 // pred_check
        _
      $region34: #{tpu_custom_call.1} parent=5 // pred_check_branch
        %220 = sbr.rel (%p217) target = $region36
      $region35: #{tpu_custom_call.1} parent=5 // pred_region
        %s221 = ssub.s32 %s16, 1
        %s222 = sand.u32 %s43, 1
        %s223 = scalar_lea.sflag [#allocation3], %s222
        %s224 = sand.u32 %s43, 1
        %s225 = smul.addr %s224, 256
        %s226 = scalar_lea.vmem [#allocation2], %s225
        // Predicated region
        $region37: #{tpu_custom_call.1} parent=35 // pred_check
          %p227 = pneg %p56
        $region38: #{tpu_custom_call.1} parent=35 // pred_check_branch
          %229 = sbr.rel (%p227) target = $region40
        $region39: #{tpu_custom_call.1} parent=35 // pred_region
          %231 = dma.done %s223, 4096
        $region40: #{tpu_custom_call.1} parent=35 // pred_fallthru
          _
        %s232 = sand.u32 %s43, 1
        %s233 = scalar_lea.sflag [#allocation3], %s232
        %s234 = sand.u32 %s43, 1
        %s235 = smul.addr %s234, 256
        %s236 = scalar_lea.vmem [#allocation2], %s235
        %p237 = pneg %p56
        %p238 = pneg %p53
        %p239 = scmp.lt.s32.totalorder %s25, 0
        %s240 = scalar_select %p239, %s25, 0
        %s241 = smul.addr %s240, 8
        %s242 = scalar_lea.vmem %s1, %s241
        %p243 = pneg %p82
        %p244 = pneg %p79
        %p245 = scmp.lt.s32.totalorder %s25, 0
        %s246 = scalar_select %p245, %s25, 0
        %s247 = scalar_lea.vmem %s2, %s246
        %p248 = pneg %p108
        %p249 = pneg %p105
        %p250 = pneg %p129
        %p251 = pneg %p126
        %p252 = pneg %p157
        %p253 = pneg %p154
        %s254 = sand.u32 %s144, 1
        %s255 = scalar_lea.sflag [#allocation4], %s254
        %s256 = sand.u32 %s144, 1
        %s257 = smul.addr %s256, 256
        %s258 = scalar_lea.vmem [#allocation5], %s257
        %p259 = scmp.lt.s32.totalorder %s25, 0
        %s260 = scalar_select %p259, %s25, 0
        %s261 = smul.addr %s260, 8
        %s262 = scalar_lea.vmem %s1, %s261
        %p263 = scmp.lt.s32.totalorder %s25, 0
        %s264 = scalar_select %p263, %s25, 0
        %s265 = scalar_lea.vmem %s2, %s264
        %v266 = vld [vmem:[%s226] sm:$0xff]
        %v267 = vld [vmem:[%s226 + $0x8] sm:$0xff]
        %v268 = vld [vmem:[%s226 + $0x10] sm:$0xff]
        %v269 = vld [vmem:[%s226 + $0x18] sm:$0xff]
        %v270 = vld [vmem:[%s226 + $0x20] sm:$0xff]
        %v271 = vld [vmem:[%s226 + $0x28] sm:$0xff]
        %v272 = vld [vmem:[%s226 + $0x30] sm:$0xff]
        %v273 = vld [vmem:[%s226 + $0x38] sm:$0xff]
        %v274 = vld [vmem:[%s226 + $0x40] sm:$0xff]
        %v275 = vld [vmem:[%s226 + $0x48] sm:$0xff]
        %v276 = vld [vmem:[%s226 + $0x50] sm:$0xff]
        %v277 = vld [vmem:[%s226 + $0x58] sm:$0xff]
        %v278 = vld [vmem:[%s226 + $0x60] sm:$0xff]
        %v279 = vld [vmem:[%s226 + $0x68] sm:$0xff]
        %v280 = vld [vmem:[%s226 + $0x70] sm:$0xff]
        %v281 = vld [vmem:[%s226 + $0x78] sm:$0xff]
        %v282 = vld [vmem:[%s226 + $0x80] sm:$0xff]
        %v283 = vld [vmem:[%s226 + $0x88] sm:$0xff]
        %v284 = vld [vmem:[%s226 + $0x90] sm:$0xff]
        %v285 = vld [vmem:[%s226 + $0x98] sm:$0xff]
        %v286 = vld [vmem:[%s226 + $0xa0] sm:$0xff]
        %v287 = vld [vmem:[%s226 + $0xa8] sm:$0xff]
        %v288 = vld [vmem:[%s226 + $0xb0] sm:$0xff]
        %v289 = vld [vmem:[%s226 + $0xb8] sm:$0xff]
        %v290 = vld [vmem:[%s226 + $0xc0] sm:$0xff]
        %v291 = vld [vmem:[%s226 + $0xc8] sm:$0xff]
        %v292 = vld [vmem:[%s226 + $0xd0] sm:$0xff]
        %v293 = vld [vmem:[%s226 + $0xd8] sm:$0xff]
        %v294 = vld [vmem:[%s226 + $0xe0] sm:$0xff]
        %v295 = vld [vmem:[%s226 + $0xe8] sm:$0xff]
        %v296 = vld [vmem:[%s226 + $0xf0] sm:$0xff]
        %v297 = vld [vmem:[%s226 + $0xf8] sm:$0xff]
        %v298 = vld [vmem:[%s262] sm:$0xff]
        %v299 = vld [vmem:[%s262 + $0x8] sm:$0x1]
        %v300 = vld [vmem:[%s265] sm:$0x1]
        %v301 = vld [vmem:[%s3] sm:$0xff]
        %v302 = vld [vmem:[%s3 + $0x8] sm:$0xff]
        %v303 = vld [vmem:[%s3 + $0x10] sm:$0xff]
        %v304 = vld [vmem:[%s3 + $0x18] sm:$0xff]
        %v305 = vld [vmem:[%s3 + $0x20] sm:$0xff]
        %v306 = vld [vmem:[%s3 + $0x28] sm:$0xff]
        %v307 = vld [vmem:[%s3 + $0x30] sm:$0xff]
        %v308 = vld [vmem:[%s3 + $0x38] sm:$0xff]
        %v309 = vld [vmem:[%s3 + $0x40] sm:$0xff]
        %v310 = vld [vmem:[%s3 + $0x48] sm:$0xff]
        %v311 = vld [vmem:[%s3 + $0x50] sm:$0xff]
        %v312 = vld [vmem:[%s3 + $0x58] sm:$0xff]
        %v313 = vld [vmem:[%s3 + $0x60] sm:$0xff]
        %v314 = vld [vmem:[%s3 + $0x68] sm:$0xff]
        %v315 = vld [vmem:[%s3 + $0x70] sm:$0xff]
        %v316 = vld [vmem:[%s3 + $0x78] sm:$0xff]
        %v317 = vld [vmem:[%s3 + $0x80] sm:$0xff]
        %v318 = vld [vmem:[%s3 + $0x88] sm:$0xff]
        %v319 = vld [vmem:[%s3 + $0x90] sm:$0xff]
        %v320 = vld [vmem:[%s3 + $0x98] sm:$0xff]
        %v321 = vld [vmem:[%s3 + $0xa0] sm:$0xff]
        %v322 = vld [vmem:[%s3 + $0xa8] sm:$0xff]
        %v323 = vld [vmem:[%s3 + $0xb0] sm:$0xff]
        %v324 = vld [vmem:[%s3 + $0xb8] sm:$0xff]
        %v325 = vld [vmem:[%s3 + $0xc0] sm:$0xff]
        %v326 = vld [vmem:[%s3 + $0xc8] sm:$0xff]
        %v327 = vld [vmem:[%s3 + $0xd0] sm:$0xff]
        %v328 = vld [vmem:[%s3 + $0xd8] sm:$0xff]
        %v329 = vld [vmem:[%s3 + $0xe0] sm:$0xff]
        %v330 = vld [vmem:[%s3 + $0xe8] sm:$0xff]
        %v331 = vld [vmem:[%s3 + $0xf0] sm:$0xff]
        %v332 = vld [vmem:[%s3 + $0xf8] sm:$0xff]
        %v333 = vrot.slane %v266, 7
        %v334 = vrot.slane %v267, 7
        %v335 = vrot.slane %v268, 7
        %v336 = vrot.slane %v269, 7
        %v337 = vrot.slane %v270, 7
        %v338 = vrot.slane %v271, 7
        %v339 = vrot.slane %v272, 7
        %v340 = vrot.slane %v273, 7
        %v341 = vrot.slane %v274, 7
        %v342 = vrot.slane %v275, 7
        %v343 = vrot.slane %v276, 7
        %v344 = vrot.slane %v277, 7
        %v345 = vrot.slane %v278, 7
        %v346 = vrot.slane %v279, 7
        %v347 = vrot.slane %v280, 7
        %v348 = vrot.slane %v281, 7
        %v349 = vrot.slane %v282, 7
        %v350 = vrot.slane %v283, 7
        %v351 = vrot.slane %v284, 7
        %v352 = vrot.slane %v285, 7
        %v353 = vrot.slane %v286, 7
        %v354 = vrot.slane %v287, 7
        %v355 = vrot.slane %v288, 7
        %v356 = vrot.slane %v289, 7
        %v357 = vrot.slane %v290, 7
        %v358 = vrot.slane %v291, 7
        %v359 = vrot.slane %v292, 7
        %v360 = vrot.slane %v293, 7
        %v361 = vrot.slane %v294, 7
        %v362 = vrot.slane %v295, 7
        %v363 = vrot.slane %v296, 7
        %v364 = vrot.slane %v297, 7
        %v365 = vlaneseq
        %v366 = vshrl.u32 %v365, 7
        %vm367 = vcmp.lt.s32.totalorder %v366, 1
        %v368 = vsel %vm367, %v363, %v364
        %v369 = vsel %vm367, %v362, %v363
        %v370 = vsel %vm367, %v361, %v362
        %v371 = vsel %vm367, %v360, %v361
        %v372 = vsel %vm367, %v359, %v360
        %v373 = vsel %vm367, %v358, %v359
        %v374 = vsel %vm367, %v357, %v358
        %v375 = vsel %vm367, %v356, %v357
        %v376 = vsel %vm367, %v355, %v356
        %v377 = vsel %vm367, %v354, %v355
        %v378 = vsel %vm367, %v353, %v354
        %v379 = vsel %vm367, %v352, %v353
        %v380 = vsel %vm367, %v351, %v352
        %v381 = vsel %vm367, %v350, %v351
        %v382 = vsel %vm367, %v349, %v350
        %v383 = vsel %vm367, %v348, %v349
        %v384 = vsel %vm367, %v347, %v348
        %v385 = vsel %vm367, %v346, %v347
        %v386 = vsel %vm367, %v345, %v346
        %v387 = vsel %vm367, %v344, %v345
        %v388 = vsel %vm367, %v343, %v344
        %v389 = vsel %vm367, %v342, %v343
        %v390 = vsel %vm367, %v341, %v342
        %v391 = vsel %vm367, %v340, %v341
        %v392 = vsel %vm367, %v339, %v340
        %v393 = vsel %vm367, %v338, %v339
        %v394 = vsel %vm367, %v337, %v338
        %v395 = vsel %vm367, %v336, %v337
        %v396 = vsel %vm367, %v335, %v336
        %v397 = vsel %vm367, %v334, %v335
        %v398 = vsel %vm367, %v333, %v334
        %v399 = vsel %vm367, %v364, %v333
        %401 = vset.pattern.permute.xlu0 0
        %402 = vperm.xlu0 %401, %v301
        %v403 = vpop.permute.xlu0 %402
        %406 = vset.pattern.permute.xlu0 0
        %407 = vperm.xlu0 %406, %v302
        %v408 = vpop.permute.xlu0 %407
        %411 = vset.pattern.permute.xlu0 0
        %412 = vperm.xlu0 %411, %v303
        %v413 = vpop.permute.xlu0 %412
        %416 = vset.pattern.permute.xlu0 0
        %417 = vperm.xlu0 %416, %v304
        %v418 = vpop.permute.xlu0 %417
        %421 = vset.pattern.permute.xlu0 0
        %422 = vperm.xlu0 %421, %v305
        %v423 = vpop.permute.xlu0 %422
        %426 = vset.pattern.permute.xlu0 0
        %427 = vperm.xlu0 %426, %v306
        %v428 = vpop.permute.xlu0 %427
        %431 = vset.pattern.permute.xlu0 0
        %432 = vperm.xlu0 %431, %v307
        %v433 = vpop.permute.xlu0 %432
        %436 = vset.pattern.permute.xlu0 0
        %437 = vperm.xlu0 %436, %v308
        %v438 = vpop.permute.xlu0 %437
        %441 = vset.pattern.permute.xlu0 0
        %442 = vperm.xlu0 %441, %v309
        %v443 = vpop.permute.xlu0 %442
        %446 = vset.pattern.permute.xlu0 0
        %447 = vperm.xlu0 %446, %v310
        %v448 = vpop.permute.xlu0 %447
        %451 = vset.pattern.permute.xlu0 0
        %452 = vperm.xlu0 %451, %v311
        %v453 = vpop.permute.xlu0 %452
        %456 = vset.pattern.permute.xlu0 0
        %457 = vperm.xlu0 %456, %v312
        %v458 = vpop.permute.xlu0 %457
        %461 = vset.pattern.permute.xlu0 0
        %462 = vperm.xlu0 %461, %v313
        %v463 = vpop.permute.xlu0 %462
        %466 = vset.pattern.permute.xlu0 0
        %467 = vperm.xlu0 %466, %v314
        %v468 = vpop.permute.xlu0 %467
        %471 = vset.pattern.permute.xlu0 0
        %472 = vperm.xlu0 %471, %v315
        %v473 = vpop.permute.xlu0 %472
        %476 = vset.pattern.permute.xlu0 0
        %477 = vperm.xlu0 %476, %v316
        %v478 = vpop.permute.xlu0 %477
        %481 = vset.pattern.permute.xlu0 0
        %482 = vperm.xlu0 %481, %v317
        %v483 = vpop.permute.xlu0 %482
        %486 = vset.pattern.permute.xlu0 0
        %487 = vperm.xlu0 %486, %v318
        %v488 = vpop.permute.xlu0 %487
        %491 = vset.pattern.permute.xlu0 0
        %492 = vperm.xlu0 %491, %v319
        %v493 = vpop.permute.xlu0 %492
        %496 = vset.pattern.permute.xlu0 0
        %497 = vperm.xlu0 %496, %v320
        %v498 = vpop.permute.xlu0 %497
        %501 = vset.pattern.permute.xlu0 0
        %502 = vperm.xlu0 %501, %v321
        %v503 = vpop.permute.xlu0 %502
        %506 = vset.pattern.permute.xlu0 0
        %507 = vperm.xlu0 %506, %v322
        %v508 = vpop.permute.xlu0 %507
        %511 = vset.pattern.permute.xlu0 0
        %512 = vperm.xlu0 %511, %v323
        %v513 = vpop.permute.xlu0 %512
        %516 = vset.pattern.permute.xlu0 0
        %517 = vperm.xlu0 %516, %v324
        %v518 = vpop.permute.xlu0 %517
        %521 = vset.pattern.permute.xlu0 0
        %522 = vperm.xlu0 %521, %v325
        %v523 = vpop.permute.xlu0 %522
        %526 = vset.pattern.permute.xlu0 0
        %527 = vperm.xlu0 %526, %v326
        %v528 = vpop.permute.xlu0 %527
        %531 = vset.pattern.permute.xlu0 0
        %532 = vperm.xlu0 %531, %v327
        %v533 = vpop.permute.xlu0 %532
        %536 = vset.pattern.permute.xlu0 0
        %537 = vperm.xlu0 %536, %v328
        %v538 = vpop.permute.xlu0 %537
        %541 = vset.pattern.permute.xlu0 0
        %542 = vperm.xlu0 %541, %v329
        %v543 = vpop.permute.xlu0 %542
        %546 = vset.pattern.permute.xlu0 0
        %547 = vperm.xlu0 %546, %v330
        %v548 = vpop.permute.xlu0 %547
        %551 = vset.pattern.permute.xlu0 0
        %552 = vperm.xlu0 %551, %v331
        %v553 = vpop.permute.xlu0 %552
        %556 = vset.pattern.permute.xlu0 0
        %557 = vperm.xlu0 %556, %v332
        %v558 = vpop.permute.xlu0 %557
        %v560 = vmul.f32 %v399, %v403
        %v561 = vmul.f32 %v398, %v408
        %v562 = vmul.f32 %v397, %v413
        %v563 = vmul.f32 %v396, %v418
        %v564 = vmul.f32 %v395, %v423
        %v565 = vmul.f32 %v394, %v428
        %v566 = vmul.f32 %v393, %v433
        %v567 = vmul.f32 %v392, %v438
        %v568 = vmul.f32 %v391, %v443
        %v569 = vmul.f32 %v390, %v448
        %v570 = vmul.f32 %v389, %v453
        %v571 = vmul.f32 %v388, %v458
        %v572 = vmul.f32 %v387, %v463
        %v573 = vmul.f32 %v386, %v468
        %v574 = vmul.f32 %v385, %v473
        %v575 = vmul.f32 %v384, %v478
        %v576 = vmul.f32 %v383, %v483
        %v577 = vmul.f32 %v382, %v488
        %v578 = vmul.f32 %v381, %v493
        %v579 = vmul.f32 %v380, %v498
        %v580 = vmul.f32 %v379, %v503
        %v581 = vmul.f32 %v378, %v508
        %v582 = vmul.f32 %v377, %v513
        %v583 = vmul.f32 %v376, %v518
        %v584 = vmul.f32 %v375, %v523
        %v585 = vmul.f32 %v374, %v528
        %v586 = vmul.f32 %v373, %v533
        %v587 = vmul.f32 %v372, %v538
        %v588 = vmul.f32 %v371, %v543
        %v589 = vmul.f32 %v370, %v548
        %v590 = vmul.f32 %v369, %v553
        %v591 = vmul.f32 %v368, %v558
        %v592 = vrot.slane %v266, 1
        %v593 = vrot.slane %v267, 1
        %v594 = vrot.slane %v268, 1
        %v595 = vrot.slane %v269, 1
        %v596 = vrot.slane %v270, 1
        %v597 = vrot.slane %v271, 1
        %v598 = vrot.slane %v272, 1
        %v599 = vrot.slane %v273, 1
        %v600 = vrot.slane %v274, 1
        %v601 = vrot.slane %v275, 1
        %v602 = vrot.slane %v276, 1
        %v603 = vrot.slane %v277, 1
        %v604 = vrot.slane %v278, 1
        %v605 = vrot.slane %v279, 1
        %v606 = vrot.slane %v280, 1
        %v607 = vrot.slane %v281, 1
        %v608 = vrot.slane %v282, 1
        %v609 = vrot.slane %v283, 1
        %v610 = vrot.slane %v284, 1
        %v611 = vrot.slane %v285, 1
        %v612 = vrot.slane %v286, 1
        %v613 = vrot.slane %v287, 1
        %v614 = vrot.slane %v288, 1
        %v615 = vrot.slane %v289, 1
        %v616 = vrot.slane %v290, 1
        %v617 = vrot.slane %v291, 1
        %v618 = vrot.slane %v292, 1
        %v619 = vrot.slane %v293, 1
        %v620 = vrot.slane %v294, 1
        %v621 = vrot.slane %v295, 1
        %v622 = vrot.slane %v296, 1
        %v623 = vrot.slane %v297, 1
        %vm624 = vcmp.lt.s32.totalorder %v366, 7
        %v625 = vsel %vm624, %v622, %v623
        %v626 = vsel %vm624, %v621, %v622
        %v627 = vsel %vm624, %v620, %v621
        %v628 = vsel %vm624, %v619, %v620
        %v629 = vsel %vm624, %v618, %v619
        %v630 = vsel %vm624, %v617, %v618
        %v631 = vsel %vm624, %v616, %v617
        %v632 = vsel %vm624, %v615, %v616
        %v633 = vsel %vm624, %v614, %v615
        %v634 = vsel %vm624, %v613, %v614
        %v635 = vsel %vm624, %v612, %v613
        %v636 = vsel %vm624, %v611, %v612
        %v637 = vsel %vm624, %v610, %v611
        %v638 = vsel %vm624, %v609, %v610
        %v639 = vsel %vm624, %v608, %v609
        %v640 = vsel %vm624, %v607, %v608
        %v641 = vsel %vm624, %v606, %v607
        %v642 = vsel %vm624, %v605, %v606
        %v643 = vsel %vm624, %v604, %v605
        %v644 = vsel %vm624, %v603, %v604
        %v645 = vsel %vm624, %v602, %v603
        %v646 = vsel %vm624, %v601, %v602
        %v647 = vsel %vm624, %v600, %v601
        %v648 = vsel %vm624, %v599, %v600
        %v649 = vsel %vm624, %v598, %v599
        %v650 = vsel %vm624, %v597, %v598
        %v651 = vsel %vm624, %v596, %v597
        %v652 = vsel %vm624, %v595, %v596
        %v653 = vsel %vm624, %v594, %v595
        %v654 = vsel %vm624, %v593, %v594
        %v655 = vsel %vm624, %v592, %v593
        %v656 = vsel %vm624, %v623, %v592
        %657 = vset.pattern.permute.xlu0 1
        %658 = vperm.xlu0 %657, %v301
        %v659 = vpop.permute.xlu0 %658
        %661 = vset.pattern.permute.xlu0 1
        %662 = vperm.xlu0 %661, %v302
        %v663 = vpop.permute.xlu0 %662
        %665 = vset.pattern.permute.xlu0 1
        %666 = vperm.xlu0 %665, %v303
        %v667 = vpop.permute.xlu0 %666
        %669 = vset.pattern.permute.xlu0 1
        %670 = vperm.xlu0 %669, %v304
        %v671 = vpop.permute.xlu0 %670
        %673 = vset.pattern.permute.xlu0 1
        %674 = vperm.xlu0 %673, %v305
        %v675 = vpop.permute.xlu0 %674
        %677 = vset.pattern.permute.xlu0 1
        %678 = vperm.xlu0 %677, %v306
        %v679 = vpop.permute.xlu0 %678
        %681 = vset.pattern.permute.xlu0 1
        %682 = vperm.xlu0 %681, %v307
        %v683 = vpop.permute.xlu0 %682
        %685 = vset.pattern.permute.xlu0 1
        %686 = vperm.xlu0 %685, %v308
        %v687 = vpop.permute.xlu0 %686
        %689 = vset.pattern.permute.xlu0 1
        %690 = vperm.xlu0 %689, %v309
        %v691 = vpop.permute.xlu0 %690
        %693 = vset.pattern.permute.xlu0 1
        %694 = vperm.xlu0 %693, %v310
        %v695 = vpop.permute.xlu0 %694
        %697 = vset.pattern.permute.xlu0 1
        %698 = vperm.xlu0 %697, %v311
        %v699 = vpop.permute.xlu0 %698
        %701 = vset.pattern.permute.xlu0 1
        %702 = vperm.xlu0 %701, %v312
        %v703 = vpop.permute.xlu0 %702
        %705 = vset.pattern.permute.xlu0 1
        %706 = vperm.xlu0 %705, %v313
        %v707 = vpop.permute.xlu0 %706
        %709 = vset.pattern.permute.xlu0 1
        %710 = vperm.xlu0 %709, %v314
        %v711 = vpop.permute.xlu0 %710
        %713 = vset.pattern.permute.xlu0 1
        %714 = vperm.xlu0 %713, %v315
        %v715 = vpop.permute.xlu0 %714
        %717 = vset.pattern.permute.xlu0 1
        %718 = vperm.xlu0 %717, %v316
        %v719 = vpop.permute.xlu0 %718
        %721 = vset.pattern.permute.xlu0 1
        %722 = vperm.xlu0 %721, %v317
        %v723 = vpop.permute.xlu0 %722
        %725 = vset.pattern.permute.xlu0 1
        %726 = vperm.xlu0 %725, %v318
        %v727 = vpop.permute.xlu0 %726
        %729 = vset.pattern.permute.xlu0 1
        %730 = vperm.xlu0 %729, %v319
        %v731 = vpop.permute.xlu0 %730
        %733 = vset.pattern.permute.xlu0 1
        %734 = vperm.xlu0 %733, %v320
        %v735 = vpop.permute.xlu0 %734
        %737 = vset.pattern.permute.xlu0 1
        %738 = vperm.xlu0 %737, %v321
        %v739 = vpop.permute.xlu0 %738
        %741 = vset.pattern.permute.xlu0 1
        %742 = vperm.xlu0 %741, %v322
        %v743 = vpop.permute.xlu0 %742
        %745 = vset.pattern.permute.xlu0 1
        %746 = vperm.xlu0 %745, %v323
        %v747 = vpop.permute.xlu0 %746
        %749 = vset.pattern.permute.xlu0 1
        %750 = vperm.xlu0 %749, %v324
        %v751 = vpop.permute.xlu0 %750
        %753 = vset.pattern.permute.xlu0 1
        %754 = vperm.xlu0 %753, %v325
        %v755 = vpop.permute.xlu0 %754
        %757 = vset.pattern.permute.xlu0 1
        %758 = vperm.xlu0 %757, %v326
        %v759 = vpop.permute.xlu0 %758
        %761 = vset.pattern.permute.xlu0 1
        %762 = vperm.xlu0 %761, %v327
        %v763 = vpop.permute.xlu0 %762
        %765 = vset.pattern.permute.xlu0 1
        %766 = vperm.xlu0 %765, %v328
        %v767 = vpop.permute.xlu0 %766
        %769 = vset.pattern.permute.xlu0 1
        %770 = vperm.xlu0 %769, %v329
        %v771 = vpop.permute.xlu0 %770
        %773 = vset.pattern.permute.xlu0 1
        %774 = vperm.xlu0 %773, %v330
        %v775 = vpop.permute.xlu0 %774
        %777 = vset.pattern.permute.xlu0 1
        %778 = vperm.xlu0 %777, %v331
        %v779 = vpop.permute.xlu0 %778
        %781 = vset.pattern.permute.xlu0 1
        %782 = vperm.xlu0 %781, %v332
        %v783 = vpop.permute.xlu0 %782
        %v785 = vmul.f32 %v655, %v659
        %v786 = vmul.f32 %v654, %v663
        %v787 = vmul.f32 %v653, %v667
        %v788 = vmul.f32 %v652, %v671
        %v789 = vmul.f32 %v651, %v675
        %v790 = vmul.f32 %v650, %v679
        %v791 = vmul.f32 %v649, %v683
        %v792 = vmul.f32 %v648, %v687
        %v793 = vmul.f32 %v647, %v691
        %v794 = vmul.f32 %v646, %v695
        %v795 = vmul.f32 %v645, %v699
        %v796 = vmul.f32 %v644, %v703
        %v797 = vmul.f32 %v643, %v707
        %v798 = vmul.f32 %v642, %v711
        %v799 = vmul.f32 %v641, %v715
        %v800 = vmul.f32 %v640, %v719
        %v801 = vmul.f32 %v639, %v723
        %v802 = vmul.f32 %v638, %v727
        %v803 = vmul.f32 %v637, %v731
        %v804 = vmul.f32 %v636, %v735
        %v805 = vmul.f32 %v635, %v739
        %v806 = vmul.f32 %v634, %v743
        %v807 = vmul.f32 %v633, %v747
        %v808 = vmul.f32 %v632, %v751
        %v809 = vmul.f32 %v631, %v755
        %v810 = vmul.f32 %v630, %v759
        %v811 = vmul.f32 %v629, %v763
        %v812 = vmul.f32 %v628, %v767
        %v813 = vmul.f32 %v627, %v771
        %v814 = vmul.f32 %v626, %v775
        %v815 = vmul.f32 %v625, %v779
        %v816 = vmul.f32 %v656, %v783
        %v818 = vperm.slane %v300, 0
        %v820 = vperm.slane %v298, 0
        %v821 = vmul.f32 %v560, %v820
        %v822 = vmul.f32 %v561, %v820
        %v823 = vmul.f32 %v562, %v820
        %v824 = vmul.f32 %v563, %v820
        %v825 = vmul.f32 %v564, %v820
        %v826 = vmul.f32 %v565, %v820
        %v827 = vmul.f32 %v566, %v820
        %v828 = vmul.f32 %v567, %v820
        %v829 = vmul.f32 %v568, %v820
        %v830 = vmul.f32 %v569, %v820
        %v831 = vmul.f32 %v570, %v820
        %v832 = vmul.f32 %v571, %v820
        %v833 = vmul.f32 %v572, %v820
        %v834 = vmul.f32 %v573, %v820
        %v835 = vmul.f32 %v574, %v820
        %v836 = vmul.f32 %v575, %v820
        %v837 = vmul.f32 %v576, %v820
        %v838 = vmul.f32 %v577, %v820
        %v839 = vmul.f32 %v578, %v820
        %v840 = vmul.f32 %v579, %v820
        %v841 = vmul.f32 %v580, %v820
        %v842 = vmul.f32 %v581, %v820
        %v843 = vmul.f32 %v582, %v820
        %v844 = vmul.f32 %v583, %v820
        %v845 = vmul.f32 %v584, %v820
        %v846 = vmul.f32 %v585, %v820
        %v847 = vmul.f32 %v586, %v820
        %v848 = vmul.f32 %v587, %v820
        %v849 = vmul.f32 %v588, %v820
        %v850 = vmul.f32 %v589, %v820
        %v851 = vmul.f32 %v590, %v820
        %v852 = vmul.f32 %v591, %v820
        %v853 = vperm.slane %v298, 1
        %v854 = vmul.f32 %v266, %v853
        %v855 = vmul.f32 %v267, %v853
        %v856 = vmul.f32 %v268, %v853
        %v857 = vmul.f32 %v269, %v853
        %v858 = vmul.f32 %v270, %v853
        %v859 = vmul.f32 %v271, %v853
        %v860 = vmul.f32 %v272, %v853
        %v861 = vmul.f32 %v273, %v853
        %v862 = vmul.f32 %v274, %v853
        %v863 = vmul.f32 %v275, %v853
        %v864 = vmul.f32 %v276, %v853
        %v865 = vmul.f32 %v277, %v853
        %v866 = vmul.f32 %v278, %v853
        %v867 = vmul.f32 %v279, %v853
        %v868 = vmul.f32 %v280, %v853
        %v869 = vmul.f32 %v281, %v853
        %v870 = vmul.f32 %v282, %v853
        %v871 = vmul.f32 %v283, %v853
        %v872 = vmul.f32 %v284, %v853
        %v873 = vmul.f32 %v285, %v853
        %v874 = vmul.f32 %v286, %v853
        %v875 = vmul.f32 %v287, %v853
        %v876 = vmul.f32 %v288, %v853
        %v877 = vmul.f32 %v289, %v853
        %v878 = vmul.f32 %v290, %v853
        %v879 = vmul.f32 %v291, %v853
        %v880 = vmul.f32 %v292, %v853
        %v881 = vmul.f32 %v293, %v853
        %v882 = vmul.f32 %v294, %v853
        %v883 = vmul.f32 %v295, %v853
        %v884 = vmul.f32 %v296, %v853
        %v885 = vmul.f32 %v297, %v853
        %v886 = vadd.f32 %v821, %v854
        %v887 = vadd.f32 %v822, %v855
        %v888 = vadd.f32 %v823, %v856
        %v889 = vadd.f32 %v824, %v857
        %v890 = vadd.f32 %v825, %v858
        %v891 = vadd.f32 %v826, %v859
        %v892 = vadd.f32 %v827, %v860
        %v893 = vadd.f32 %v828, %v861
        %v894 = vadd.f32 %v829, %v862
        %v895 = vadd.f32 %v830, %v863
        %v896 = vadd.f32 %v831, %v864
        %v897 = vadd.f32 %v832, %v865
        %v898 = vadd.f32 %v833, %v866
        %v899 = vadd.f32 %v834, %v867
        %v900 = vadd.f32 %v835, %v868
        %v901 = vadd.f32 %v836, %v869
        %v902 = vadd.f32 %v837, %v870
        %v903 = vadd.f32 %v838, %v871
        %v904 = vadd.f32 %v839, %v872
        %v905 = vadd.f32 %v840, %v873
        %v906 = vadd.f32 %v841, %v874
        %v907 = vadd.f32 %v842, %v875
        %v908 = vadd.f32 %v843, %v876
        %v909 = vadd.f32 %v844, %v877
        %v910 = vadd.f32 %v845, %v878
        %v911 = vadd.f32 %v846, %v879
        %v912 = vadd.f32 %v847, %v880
        %v913 = vadd.f32 %v848, %v881
        %v914 = vadd.f32 %v849, %v882
        %v915 = vadd.f32 %v850, %v883
        %v916 = vadd.f32 %v851, %v884
        %v917 = vadd.f32 %v852, %v885
        %v918 = vperm.slane %v298, 2
        %v919 = vmul.f32 %v785, %v918
        %v920 = vmul.f32 %v786, %v918
        %v921 = vmul.f32 %v787, %v918
        %v922 = vmul.f32 %v788, %v918
        %v923 = vmul.f32 %v789, %v918
        %v924 = vmul.f32 %v790, %v918
        %v925 = vmul.f32 %v791, %v918
        %v926 = vmul.f32 %v792, %v918
        %v927 = vmul.f32 %v793, %v918
        %v928 = vmul.f32 %v794, %v918
        %v929 = vmul.f32 %v795, %v918
        %v930 = vmul.f32 %v796, %v918
        %v931 = vmul.f32 %v797, %v918
        %v932 = vmul.f32 %v798, %v918
        %v933 = vmul.f32 %v799, %v918
        %v934 = vmul.f32 %v800, %v918
        %v935 = vmul.f32 %v801, %v918
        %v936 = vmul.f32 %v802, %v918
        %v937 = vmul.f32 %v803, %v918
        %v938 = vmul.f32 %v804, %v918
        %v939 = vmul.f32 %v805, %v918
        %v940 = vmul.f32 %v806, %v918
        %v941 = vmul.f32 %v807, %v918
        %v942 = vmul.f32 %v808, %v918
        %v943 = vmul.f32 %v809, %v918
        %v944 = vmul.f32 %v810, %v918
        %v945 = vmul.f32 %v811, %v918
        %v946 = vmul.f32 %v812, %v918
        %v947 = vmul.f32 %v813, %v918
        %v948 = vmul.f32 %v814, %v918
        %v949 = vmul.f32 %v815, %v918
        %v950 = vmul.f32 %v816, %v918
        %v951 = vadd.f32 %v886, %v919
        %v952 = vadd.f32 %v887, %v920
        %v953 = vadd.f32 %v888, %v921
        %v954 = vadd.f32 %v889, %v922
        %v955 = vadd.f32 %v890, %v923
        %v956 = vadd.f32 %v891, %v924
        %v957 = vadd.f32 %v892, %v925
        %v958 = vadd.f32 %v893, %v926
        %v959 = vadd.f32 %v894, %v927
        %v960 = vadd.f32 %v895, %v928
        %v961 = vadd.f32 %v896, %v929
        %v962 = vadd.f32 %v897, %v930
        %v963 = vadd.f32 %v898, %v931
        %v964 = vadd.f32 %v899, %v932
        %v965 = vadd.f32 %v900, %v933
        %v966 = vadd.f32 %v901, %v934
        %v967 = vadd.f32 %v902, %v935
        %v968 = vadd.f32 %v903, %v936
        %v969 = vadd.f32 %v904, %v937
        %v970 = vadd.f32 %v905, %v938
        %v971 = vadd.f32 %v906, %v939
        %v972 = vadd.f32 %v907, %v940
        %v973 = vadd.f32 %v908, %v941
        %v974 = vadd.f32 %v909, %v942
        %v975 = vadd.f32 %v910, %v943
        %v976 = vadd.f32 %v911, %v944
        %v977 = vadd.f32 %v912, %v945
        %v978 = vadd.f32 %v913, %v946
        %v979 = vadd.f32 %v914, %v947
        %v980 = vadd.f32 %v915, %v948
        %v981 = vadd.f32 %v916, %v949
        %v982 = vadd.f32 %v917, %v950
        %983 = vset.pattern.permute.xlu0 2
        %984 = vperm.xlu0 %983, %v301
        %v985 = vpop.permute.xlu0 %984
        %987 = vset.pattern.permute.xlu0 2
        %988 = vperm.xlu0 %987, %v302
        %v989 = vpop.permute.xlu0 %988
        %991 = vset.pattern.permute.xlu0 2
        %992 = vperm.xlu0 %991, %v303
        %v993 = vpop.permute.xlu0 %992
        %995 = vset.pattern.permute.xlu0 2
        %996 = vperm.xlu0 %995, %v304
        %v997 = vpop.permute.xlu0 %996
        %999 = vset.pattern.permute.xlu0 2
        %1000 = vperm.xlu0 %999, %v305
        %v1001 = vpop.permute.xlu0 %1000
        %1003 = vset.pattern.permute.xlu0 2
        %1004 = vperm.xlu0 %1003, %v306
        %v1005 = vpop.permute.xlu0 %1004
        %1007 = vset.pattern.permute.xlu0 2
        %1008 = vperm.xlu0 %1007, %v307
        %v1009 = vpop.permute.xlu0 %1008
        %1011 = vset.pattern.permute.xlu0 2
        %1012 = vperm.xlu0 %1011, %v308
        %v1013 = vpop.permute.xlu0 %1012
        %1015 = vset.pattern.permute.xlu0 2
        %1016 = vperm.xlu0 %1015, %v309
        %v1017 = vpop.permute.xlu0 %1016
        %1019 = vset.pattern.permute.xlu0 2
        %1020 = vperm.xlu0 %1019, %v310
        %v1021 = vpop.permute.xlu0 %1020
        %1023 = vset.pattern.permute.xlu0 2
        %1024 = vperm.xlu0 %1023, %v311
        %v1025 = vpop.permute.xlu0 %1024
        %1027 = vset.pattern.permute.xlu0 2
        %1028 = vperm.xlu0 %1027, %v312
        %v1029 = vpop.permute.xlu0 %1028
        %1031 = vset.pattern.permute.xlu0 2
        %1032 = vperm.xlu0 %1031, %v313
        %v1033 = vpop.permute.xlu0 %1032
        %1035 = vset.pattern.permute.xlu0 2
        %1036 = vperm.xlu0 %1035, %v314
        %v1037 = vpop.permute.xlu0 %1036
        %1039 = vset.pattern.permute.xlu0 2
        %1040 = vperm.xlu0 %1039, %v315
        %v1041 = vpop.permute.xlu0 %1040
        %1043 = vset.pattern.permute.xlu0 2
        %1044 = vperm.xlu0 %1043, %v316
        %v1045 = vpop.permute.xlu0 %1044
        %1047 = vset.pattern.permute.xlu0 2
        %1048 = vperm.xlu0 %1047, %v317
        %v1049 = vpop.permute.xlu0 %1048
        %1051 = vset.pattern.permute.xlu0 2
        %1052 = vperm.xlu0 %1051, %v318
        %v1053 = vpop.permute.xlu0 %1052
        %1055 = vset.pattern.permute.xlu0 2
        %1056 = vperm.xlu0 %1055, %v319
        %v1057 = vpop.permute.xlu0 %1056
        %1059 = vset.pattern.permute.xlu0 2
        %1060 = vperm.xlu0 %1059, %v320
        %v1061 = vpop.permute.xlu0 %1060
        %1063 = vset.pattern.permute.xlu0 2
        %1064 = vperm.xlu0 %1063, %v321
        %v1065 = vpop.permute.xlu0 %1064
        %1067 = vset.pattern.permute.xlu0 2
        %1068 = vperm.xlu0 %1067, %v322
        %v1069 = vpop.permute.xlu0 %1068
        %1071 = vset.pattern.permute.xlu0 2
        %1072 = vperm.xlu0 %1071, %v323
        %v1073 = vpop.permute.xlu0 %1072
        %1075 = vset.pattern.permute.xlu0 2
        %1076 = vperm.xlu0 %1075, %v324
        %v1077 = vpop.permute.xlu0 %1076
        %1079 = vset.pattern.permute.xlu0 2
        %1080 = vperm.xlu0 %1079, %v325
        %v1081 = vpop.permute.xlu0 %1080
        %1083 = vset.pattern.permute.xlu0 2
        %1084 = vperm.xlu0 %1083, %v326
        %v1085 = vpop.permute.xlu0 %1084
        %1087 = vset.pattern.permute.xlu0 2
        %1088 = vperm.xlu0 %1087, %v327
        %v1089 = vpop.permute.xlu0 %1088
        %1091 = vset.pattern.permute.xlu0 2
        %1092 = vperm.xlu0 %1091, %v328
        %v1093 = vpop.permute.xlu0 %1092
        %1095 = vset.pattern.permute.xlu0 2
        %1096 = vperm.xlu0 %1095, %v329
        %v1097 = vpop.permute.xlu0 %1096
        %1099 = vset.pattern.permute.xlu0 2
        %1100 = vperm.xlu0 %1099, %v330
        %v1101 = vpop.permute.xlu0 %1100
        %1103 = vset.pattern.permute.xlu0 2
        %1104 = vperm.xlu0 %1103, %v331
        %v1105 = vpop.permute.xlu0 %1104
        %1107 = vset.pattern.permute.xlu0 2
        %1108 = vperm.xlu0 %1107, %v332
        %v1109 = vpop.permute.xlu0 %1108
        %v1111 = vmul.f32 %v981, %v985
        %v1112 = vmul.f32 %v982, %v989
        %v1113 = vmul.f32 %v951, %v993
        %v1114 = vmul.f32 %v952, %v997
        %v1115 = vmul.f32 %v953, %v1001
        %v1116 = vmul.f32 %v954, %v1005
        %v1117 = vmul.f32 %v955, %v1009
        %v1118 = vmul.f32 %v956, %v1013
        %v1119 = vmul.f32 %v957, %v1017
        %v1120 = vmul.f32 %v958, %v1021
        %v1121 = vmul.f32 %v959, %v1025
        %v1122 = vmul.f32 %v960, %v1029
        %v1123 = vmul.f32 %v961, %v1033
        %v1124 = vmul.f32 %v962, %v1037
        %v1125 = vmul.f32 %v963, %v1041
        %v1126 = vmul.f32 %v964, %v1045
        %v1127 = vmul.f32 %v965, %v1049
        %v1128 = vmul.f32 %v966, %v1053
        %v1129 = vmul.f32 %v967, %v1057
        %v1130 = vmul.f32 %v968, %v1061
        %v1131 = vmul.f32 %v969, %v1065
        %v1132 = vmul.f32 %v970, %v1069
        %v1133 = vmul.f32 %v971, %v1073
        %v1134 = vmul.f32 %v972, %v1077
        %v1135 = vmul.f32 %v973, %v1081
        %v1136 = vmul.f32 %v974, %v1085
        %v1137 = vmul.f32 %v975, %v1089
        %v1138 = vmul.f32 %v976, %v1093
        %v1139 = vmul.f32 %v977, %v1097
        %v1140 = vmul.f32 %v978, %v1101
        %v1141 = vmul.f32 %v979, %v1105
        %v1142 = vmul.f32 %v980, %v1109
        %v1143 = vadd.f32 %v818, %v1111
        %v1144 = vadd.f32 %v818, %v1112
        %v1145 = vadd.f32 %v818, %v1113
        %v1146 = vadd.f32 %v818, %v1114
        %v1147 = vadd.f32 %v818, %v1115
        %v1148 = vadd.f32 %v818, %v1116
        %v1149 = vadd.f32 %v818, %v1117
        %v1150 = vadd.f32 %v818, %v1118
        %v1151 = vadd.f32 %v818, %v1119
        %v1152 = vadd.f32 %v818, %v1120
        %v1153 = vadd.f32 %v818, %v1121
        %v1154 = vadd.f32 %v818, %v1122
        %v1155 = vadd.f32 %v818, %v1123
        %v1156 = vadd.f32 %v818, %v1124
        %v1157 = vadd.f32 %v818, %v1125
        %v1158 = vadd.f32 %v818, %v1126
        %v1159 = vadd.f32 %v818, %v1127
        %v1160 = vadd.f32 %v818, %v1128
        %v1161 = vadd.f32 %v818, %v1129
        %v1162 = vadd.f32 %v818, %v1130
        %v1163 = vadd.f32 %v818, %v1131
        %v1164 = vadd.f32 %v818, %v1132
        %v1165 = vadd.f32 %v818, %v1133
        %v1166 = vadd.f32 %v818, %v1134
        %v1167 = vadd.f32 %v818, %v1135
        %v1168 = vadd.f32 %v818, %v1136
        %v1169 = vadd.f32 %v818, %v1137
        %v1170 = vadd.f32 %v818, %v1138
        %v1171 = vadd.f32 %v818, %v1139
        %v1172 = vadd.f32 %v818, %v1140
        %v1173 = vadd.f32 %v818, %v1141
        %v1174 = vadd.f32 %v818, %v1142
        %v1175 = vperm.slane %v298, 3
        %v1176 = vmul.f32 %v560, %v1175
        %v1177 = vmul.f32 %v561, %v1175
        %v1178 = vmul.f32 %v562, %v1175
        %v1179 = vmul.f32 %v563, %v1175
        %v1180 = vmul.f32 %v564, %v1175
        %v1181 = vmul.f32 %v565, %v1175
        %v1182 = vmul.f32 %v566, %v1175
        %v1183 = vmul.f32 %v567, %v1175
        %v1184 = vmul.f32 %v568, %v1175
        %v1185 = vmul.f32 %v569, %v1175
        %v1186 = vmul.f32 %v570, %v1175
        %v1187 = vmul.f32 %v571, %v1175
        %v1188 = vmul.f32 %v572, %v1175
        %v1189 = vmul.f32 %v573, %v1175
        %v1190 = vmul.f32 %v574, %v1175
        %v1191 = vmul.f32 %v575, %v1175
        %v1192 = vmul.f32 %v576, %v1175
        %v1193 = vmul.f32 %v577, %v1175
        %v1194 = vmul.f32 %v578, %v1175
        %v1195 = vmul.f32 %v579, %v1175
        %v1196 = vmul.f32 %v580, %v1175
        %v1197 = vmul.f32 %v581, %v1175
        %v1198 = vmul.f32 %v582, %v1175
        %v1199 = vmul.f32 %v583, %v1175
        %v1200 = vmul.f32 %v584, %v1175
        %v1201 = vmul.f32 %v585, %v1175
        %v1202 = vmul.f32 %v586, %v1175
        %v1203 = vmul.f32 %v587, %v1175
        %v1204 = vmul.f32 %v588, %v1175
        %v1205 = vmul.f32 %v589, %v1175
        %v1206 = vmul.f32 %v590, %v1175
        %v1207 = vmul.f32 %v591, %v1175
        %v1208 = vperm.slane %v298, 4
        %v1209 = vmul.f32 %v266, %v1208
        %v1210 = vmul.f32 %v267, %v1208
        %v1211 = vmul.f32 %v268, %v1208
        %v1212 = vmul.f32 %v269, %v1208
        %v1213 = vmul.f32 %v270, %v1208
        %v1214 = vmul.f32 %v271, %v1208
        %v1215 = vmul.f32 %v272, %v1208
        %v1216 = vmul.f32 %v273, %v1208
        %v1217 = vmul.f32 %v274, %v1208
        %v1218 = vmul.f32 %v275, %v1208
        %v1219 = vmul.f32 %v276, %v1208
        %v1220 = vmul.f32 %v277, %v1208
        %v1221 = vmul.f32 %v278, %v1208
        %v1222 = vmul.f32 %v279, %v1208
        %v1223 = vmul.f32 %v280, %v1208
        %v1224 = vmul.f32 %v281, %v1208
        %v1225 = vmul.f32 %v282, %v1208
        %v1226 = vmul.f32 %v283, %v1208
        %v1227 = vmul.f32 %v284, %v1208
        %v1228 = vmul.f32 %v285, %v1208
        %v1229 = vmul.f32 %v286, %v1208
        %v1230 = vmul.f32 %v287, %v1208
        %v1231 = vmul.f32 %v288, %v1208
        %v1232 = vmul.f32 %v289, %v1208
        %v1233 = vmul.f32 %v290, %v1208
        %v1234 = vmul.f32 %v291, %v1208
        %v1235 = vmul.f32 %v292, %v1208
        %v1236 = vmul.f32 %v293, %v1208
        %v1237 = vmul.f32 %v294, %v1208
        %v1238 = vmul.f32 %v295, %v1208
        %v1239 = vmul.f32 %v296, %v1208
        %v1240 = vmul.f32 %v297, %v1208
        %v1241 = vadd.f32 %v1176, %v1209
        %v1242 = vadd.f32 %v1177, %v1210
        %v1243 = vadd.f32 %v1178, %v1211
        %v1244 = vadd.f32 %v1179, %v1212
        %v1245 = vadd.f32 %v1180, %v1213
        %v1246 = vadd.f32 %v1181, %v1214
        %v1247 = vadd.f32 %v1182, %v1215
        %v1248 = vadd.f32 %v1183, %v1216
        %v1249 = vadd.f32 %v1184, %v1217
        %v1250 = vadd.f32 %v1185, %v1218
        %v1251 = vadd.f32 %v1186, %v1219
        %v1252 = vadd.f32 %v1187, %v1220
        %v1253 = vadd.f32 %v1188, %v1221
        %v1254 = vadd.f32 %v1189, %v1222
        %v1255 = vadd.f32 %v1190, %v1223
        %v1256 = vadd.f32 %v1191, %v1224
        %v1257 = vadd.f32 %v1192, %v1225
        %v1258 = vadd.f32 %v1193, %v1226
        %v1259 = vadd.f32 %v1194, %v1227
        %v1260 = vadd.f32 %v1195, %v1228
        %v1261 = vadd.f32 %v1196, %v1229
        %v1262 = vadd.f32 %v1197, %v1230
        %v1263 = vadd.f32 %v1198, %v1231
        %v1264 = vadd.f32 %v1199, %v1232
        %v1265 = vadd.f32 %v1200, %v1233
        %v1266 = vadd.f32 %v1201, %v1234
        %v1267 = vadd.f32 %v1202, %v1235
        %v1268 = vadd.f32 %v1203, %v1236
        %v1269 = vadd.f32 %v1204, %v1237
        %v1270 = vadd.f32 %v1205, %v1238
        %v1271 = vadd.f32 %v1206, %v1239
        %v1272 = vadd.f32 %v1207, %v1240
        %v1273 = vperm.slane %v298, 5
        %v1274 = vmul.f32 %v785, %v1273
        %v1275 = vmul.f32 %v786, %v1273
        %v1276 = vmul.f32 %v787, %v1273
        %v1277 = vmul.f32 %v788, %v1273
        %v1278 = vmul.f32 %v789, %v1273
        %v1279 = vmul.f32 %v790, %v1273
        %v1280 = vmul.f32 %v791, %v1273
        %v1281 = vmul.f32 %v792, %v1273
        %v1282 = vmul.f32 %v793, %v1273
        %v1283 = vmul.f32 %v794, %v1273
        %v1284 = vmul.f32 %v795, %v1273
        %v1285 = vmul.f32 %v796, %v1273
        %v1286 = vmul.f32 %v797, %v1273
        %v1287 = vmul.f32 %v798, %v1273
        %v1288 = vmul.f32 %v799, %v1273
        %v1289 = vmul.f32 %v800, %v1273
        %v1290 = vmul.f32 %v801, %v1273
        %v1291 = vmul.f32 %v802, %v1273
        %v1292 = vmul.f32 %v803, %v1273
        %v1293 = vmul.f32 %v804, %v1273
        %v1294 = vmul.f32 %v805, %v1273
        %v1295 = vmul.f32 %v806, %v1273
        %v1296 = vmul.f32 %v807, %v1273
        %v1297 = vmul.f32 %v808, %v1273
        %v1298 = vmul.f32 %v809, %v1273
        %v1299 = vmul.f32 %v810, %v1273
        %v1300 = vmul.f32 %v811, %v1273
        %v1301 = vmul.f32 %v812, %v1273
        %v1302 = vmul.f32 %v813, %v1273
        %v1303 = vmul.f32 %v814, %v1273
        %v1304 = vmul.f32 %v815, %v1273
        %v1305 = vmul.f32 %v816, %v1273
        %v1306 = vadd.f32 %v1241, %v1274
        %v1307 = vadd.f32 %v1242, %v1275
        %v1308 = vadd.f32 %v1243, %v1276
        %v1309 = vadd.f32 %v1244, %v1277
        %v1310 = vadd.f32 %v1245, %v1278
        %v1311 = vadd.f32 %v1246, %v1279
        %v1312 = vadd.f32 %v1247, %v1280
        %v1313 = vadd.f32 %v1248, %v1281
        %v1314 = vadd.f32 %v1249, %v1282
        %v1315 = vadd.f32 %v1250, %v1283
        %v1316 = vadd.f32 %v1251, %v1284
        %v1317 = vadd.f32 %v1252, %v1285
        %v1318 = vadd.f32 %v1253, %v1286
        %v1319 = vadd.f32 %v1254, %v1287
        %v1320 = vadd.f32 %v1255, %v1288
        %v1321 = vadd.f32 %v1256, %v1289
        %v1322 = vadd.f32 %v1257, %v1290
        %v1323 = vadd.f32 %v1258, %v1291
        %v1324 = vadd.f32 %v1259, %v1292
        %v1325 = vadd.f32 %v1260, %v1293
        %v1326 = vadd.f32 %v1261, %v1294
        %v1327 = vadd.f32 %v1262, %v1295
        %v1328 = vadd.f32 %v1263, %v1296
        %v1329 = vadd.f32 %v1264, %v1297
        %v1330 = vadd.f32 %v1265, %v1298
        %v1331 = vadd.f32 %v1266, %v1299
        %v1332 = vadd.f32 %v1267, %v1300
        %v1333 = vadd.f32 %v1268, %v1301
        %v1334 = vadd.f32 %v1269, %v1302
        %v1335 = vadd.f32 %v1270, %v1303
        %v1336 = vadd.f32 %v1271, %v1304
        %v1337 = vadd.f32 %v1272, %v1305
        %v1338 = vadd.f32 %v1143, %v1306
        %v1339 = vadd.f32 %v1144, %v1307
        %v1340 = vadd.f32 %v1145, %v1308
        %v1341 = vadd.f32 %v1146, %v1309
        %v1342 = vadd.f32 %v1147, %v1310
        %v1343 = vadd.f32 %v1148, %v1311
        %v1344 = vadd.f32 %v1149, %v1312
        %v1345 = vadd.f32 %v1150, %v1313
        %v1346 = vadd.f32 %v1151, %v1314
        %v1347 = vadd.f32 %v1152, %v1315
        %v1348 = vadd.f32 %v1153, %v1316
        %v1349 = vadd.f32 %v1154, %v1317
        %v1350 = vadd.f32 %v1155, %v1318
        %v1351 = vadd.f32 %v1156, %v1319
        %v1352 = vadd.f32 %v1157, %v1320
        %v1353 = vadd.f32 %v1158, %v1321
        %v1354 = vadd.f32 %v1159, %v1322
        %v1355 = vadd.f32 %v1160, %v1323
        %v1356 = vadd.f32 %v1161, %v1324
        %v1357 = vadd.f32 %v1162, %v1325
        %v1358 = vadd.f32 %v1163, %v1326
        %v1359 = vadd.f32 %v1164, %v1327
        %v1360 = vadd.f32 %v1165, %v1328
        %v1361 = vadd.f32 %v1166, %v1329
        %v1362 = vadd.f32 %v1167, %v1330
        %v1363 = vadd.f32 %v1168, %v1331
        %v1364 = vadd.f32 %v1169, %v1332
        %v1365 = vadd.f32 %v1170, %v1333
        %v1366 = vadd.f32 %v1171, %v1334
        %v1367 = vadd.f32 %v1172, %v1335
        %v1368 = vadd.f32 %v1173, %v1336
        %v1369 = vadd.f32 %v1174, %v1337
        %v1370 = vperm.slane %v298, 6
        %v1371 = vmul.f32 %v560, %v1370
        %v1372 = vmul.f32 %v561, %v1370
        %v1373 = vmul.f32 %v562, %v1370
        %v1374 = vmul.f32 %v563, %v1370
        %v1375 = vmul.f32 %v564, %v1370
        %v1376 = vmul.f32 %v565, %v1370
        %v1377 = vmul.f32 %v566, %v1370
        %v1378 = vmul.f32 %v567, %v1370
        %v1379 = vmul.f32 %v568, %v1370
        %v1380 = vmul.f32 %v569, %v1370
        %v1381 = vmul.f32 %v570, %v1370
        %v1382 = vmul.f32 %v571, %v1370
        %v1383 = vmul.f32 %v572, %v1370
        %v1384 = vmul.f32 %v573, %v1370
        %v1385 = vmul.f32 %v574, %v1370
        %v1386 = vmul.f32 %v575, %v1370
        %v1387 = vmul.f32 %v576, %v1370
        %v1388 = vmul.f32 %v577, %v1370
        %v1389 = vmul.f32 %v578, %v1370
        %v1390 = vmul.f32 %v579, %v1370
        %v1391 = vmul.f32 %v580, %v1370
        %v1392 = vmul.f32 %v581, %v1370
        %v1393 = vmul.f32 %v582, %v1370
        %v1394 = vmul.f32 %v583, %v1370
        %v1395 = vmul.f32 %v584, %v1370
        %v1396 = vmul.f32 %v585, %v1370
        %v1397 = vmul.f32 %v586, %v1370
        %v1398 = vmul.f32 %v587, %v1370
        %v1399 = vmul.f32 %v588, %v1370
        %v1400 = vmul.f32 %v589, %v1370
        %v1401 = vmul.f32 %v590, %v1370
        %v1402 = vmul.f32 %v591, %v1370
        %v1403 = vperm.slane %v298, 7
        %v1404 = vmul.f32 %v266, %v1403
        %v1405 = vmul.f32 %v267, %v1403
        %v1406 = vmul.f32 %v268, %v1403
        %v1407 = vmul.f32 %v269, %v1403
        %v1408 = vmul.f32 %v270, %v1403
        %v1409 = vmul.f32 %v271, %v1403
        %v1410 = vmul.f32 %v272, %v1403
        %v1411 = vmul.f32 %v273, %v1403
        %v1412 = vmul.f32 %v274, %v1403
        %v1413 = vmul.f32 %v275, %v1403
        %v1414 = vmul.f32 %v276, %v1403
        %v1415 = vmul.f32 %v277, %v1403
        %v1416 = vmul.f32 %v278, %v1403
        %v1417 = vmul.f32 %v279, %v1403
        %v1418 = vmul.f32 %v280, %v1403
        %v1419 = vmul.f32 %v281, %v1403
        %v1420 = vmul.f32 %v282, %v1403
        %v1421 = vmul.f32 %v283, %v1403
        %v1422 = vmul.f32 %v284, %v1403
        %v1423 = vmul.f32 %v285, %v1403
        %v1424 = vmul.f32 %v286, %v1403
        %v1425 = vmul.f32 %v287, %v1403
        %v1426 = vmul.f32 %v288, %v1403
        %v1427 = vmul.f32 %v289, %v1403
        %v1428 = vmul.f32 %v290, %v1403
        %v1429 = vmul.f32 %v291, %v1403
        %v1430 = vmul.f32 %v292, %v1403
        %v1431 = vmul.f32 %v293, %v1403
        %v1432 = vmul.f32 %v294, %v1403
        %v1433 = vmul.f32 %v295, %v1403
        %v1434 = vmul.f32 %v296, %v1403
        %v1435 = vmul.f32 %v297, %v1403
        %v1436 = vadd.f32 %v1371, %v1404
        %v1437 = vadd.f32 %v1372, %v1405
        %v1438 = vadd.f32 %v1373, %v1406
        %v1439 = vadd.f32 %v1374, %v1407
        %v1440 = vadd.f32 %v1375, %v1408
        %v1441 = vadd.f32 %v1376, %v1409
        %v1442 = vadd.f32 %v1377, %v1410
        %v1443 = vadd.f32 %v1378, %v1411
        %v1444 = vadd.f32 %v1379, %v1412
        %v1445 = vadd.f32 %v1380, %v1413
        %v1446 = vadd.f32 %v1381, %v1414
        %v1447 = vadd.f32 %v1382, %v1415
        %v1448 = vadd.f32 %v1383, %v1416
        %v1449 = vadd.f32 %v1384, %v1417
        %v1450 = vadd.f32 %v1385, %v1418
        %v1451 = vadd.f32 %v1386, %v1419
        %v1452 = vadd.f32 %v1387, %v1420
        %v1453 = vadd.f32 %v1388, %v1421
        %v1454 = vadd.f32 %v1389, %v1422
        %v1455 = vadd.f32 %v1390, %v1423
        %v1456 = vadd.f32 %v1391, %v1424
        %v1457 = vadd.f32 %v1392, %v1425
        %v1458 = vadd.f32 %v1393, %v1426
        %v1459 = vadd.f32 %v1394, %v1427
        %v1460 = vadd.f32 %v1395, %v1428
        %v1461 = vadd.f32 %v1396, %v1429
        %v1462 = vadd.f32 %v1397, %v1430
        %v1463 = vadd.f32 %v1398, %v1431
        %v1464 = vadd.f32 %v1399, %v1432
        %v1465 = vadd.f32 %v1400, %v1433
        %v1466 = vadd.f32 %v1401, %v1434
        %v1467 = vadd.f32 %v1402, %v1435
        %v1468 = vperm.slane %v299, 0
        %v1469 = vmul.f32 %v785, %v1468
        %v1470 = vmul.f32 %v786, %v1468
        %v1471 = vmul.f32 %v787, %v1468
        %v1472 = vmul.f32 %v788, %v1468
        %v1473 = vmul.f32 %v789, %v1468
        %v1474 = vmul.f32 %v790, %v1468
        %v1475 = vmul.f32 %v791, %v1468
        %v1476 = vmul.f32 %v792, %v1468
        %v1477 = vmul.f32 %v793, %v1468
        %v1478 = vmul.f32 %v794, %v1468
        %v1479 = vmul.f32 %v795, %v1468
        %v1480 = vmul.f32 %v796, %v1468
        %v1481 = vmul.f32 %v797, %v1468
        %v1482 = vmul.f32 %v798, %v1468
        %v1483 = vmul.f32 %v799, %v1468
        %v1484 = vmul.f32 %v800, %v1468
        %v1485 = vmul.f32 %v801, %v1468
        %v1486 = vmul.f32 %v802, %v1468
        %v1487 = vmul.f32 %v803, %v1468
        %v1488 = vmul.f32 %v804, %v1468
        %v1489 = vmul.f32 %v805, %v1468
        %v1490 = vmul.f32 %v806, %v1468
        %v1491 = vmul.f32 %v807, %v1468
        %v1492 = vmul.f32 %v808, %v1468
        %v1493 = vmul.f32 %v809, %v1468
        %v1494 = vmul.f32 %v810, %v1468
        %v1495 = vmul.f32 %v811, %v1468
        %v1496 = vmul.f32 %v812, %v1468
        %v1497 = vmul.f32 %v813, %v1468
        %v1498 = vmul.f32 %v814, %v1468
        %v1499 = vmul.f32 %v815, %v1468
        %v1500 = vmul.f32 %v816, %v1468
        %v1501 = vadd.f32 %v1436, %v1469
        %v1502 = vadd.f32 %v1437, %v1470
        %v1503 = vadd.f32 %v1438, %v1471
        %v1504 = vadd.f32 %v1439, %v1472
        %v1505 = vadd.f32 %v1440, %v1473
        %v1506 = vadd.f32 %v1441, %v1474
        %v1507 = vadd.f32 %v1442, %v1475
        %v1508 = vadd.f32 %v1443, %v1476
        %v1509 = vadd.f32 %v1444, %v1477
        %v1510 = vadd.f32 %v1445, %v1478
        %v1511 = vadd.f32 %v1446, %v1479
        %v1512 = vadd.f32 %v1447, %v1480
        %v1513 = vadd.f32 %v1448, %v1481
        %v1514 = vadd.f32 %v1449, %v1482
        %v1515 = vadd.f32 %v1450, %v1483
        %v1516 = vadd.f32 %v1451, %v1484
        %v1517 = vadd.f32 %v1452, %v1485
        %v1518 = vadd.f32 %v1453, %v1486
        %v1519 = vadd.f32 %v1454, %v1487
        %v1520 = vadd.f32 %v1455, %v1488
        %v1521 = vadd.f32 %v1456, %v1489
        %v1522 = vadd.f32 %v1457, %v1490
        %v1523 = vadd.f32 %v1458, %v1491
        %v1524 = vadd.f32 %v1459, %v1492
        %v1525 = vadd.f32 %v1460, %v1493
        %v1526 = vadd.f32 %v1461, %v1494
        %v1527 = vadd.f32 %v1462, %v1495
        %v1528 = vadd.f32 %v1463, %v1496
        %v1529 = vadd.f32 %v1464, %v1497
        %v1530 = vadd.f32 %v1465, %v1498
        %v1531 = vadd.f32 %v1466, %v1499
        %v1532 = vadd.f32 %v1467, %v1500
        %1533 = vset.pattern.permute.xlu0 3
        %1534 = vperm.xlu0 %1533, %v301
        %v1535 = vpop.permute.xlu0 %1534
        %1537 = vset.pattern.permute.xlu0 3
        %1538 = vperm.xlu0 %1537, %v302
        %v1539 = vpop.permute.xlu0 %1538
        %1541 = vset.pattern.permute.xlu0 3
        %1542 = vperm.xlu0 %1541, %v303
        %v1543 = vpop.permute.xlu0 %1542
        %1545 = vset.pattern.permute.xlu0 3
        %1546 = vperm.xlu0 %1545, %v304
        %v1547 = vpop.permute.xlu0 %1546
        %1549 = vset.pattern.permute.xlu0 3
        %1550 = vperm.xlu0 %1549, %v305
        %v1551 = vpop.permute.xlu0 %1550
        %1553 = vset.pattern.permute.xlu0 3
        %1554 = vperm.xlu0 %1553, %v306
        %v1555 = vpop.permute.xlu0 %1554
        %1557 = vset.pattern.permute.xlu0 3
        %1558 = vperm.xlu0 %1557, %v307
        %v1559 = vpop.permute.xlu0 %1558
        %1561 = vset.pattern.permute.xlu0 3
        %1562 = vperm.xlu0 %1561, %v308
        %v1563 = vpop.permute.xlu0 %1562
        %1565 = vset.pattern.permute.xlu0 3
        %1566 = vperm.xlu0 %1565, %v309
        %v1567 = vpop.permute.xlu0 %1566
        %1569 = vset.pattern.permute.xlu0 3
        %1570 = vperm.xlu0 %1569, %v310
        %v1571 = vpop.permute.xlu0 %1570
        %1573 = vset.pattern.permute.xlu0 3
        %1574 = vperm.xlu0 %1573, %v311
        %v1575 = vpop.permute.xlu0 %1574
        %1577 = vset.pattern.permute.xlu0 3
        %1578 = vperm.xlu0 %1577, %v312
        %v1579 = vpop.permute.xlu0 %1578
        %1581 = vset.pattern.permute.xlu0 3
        %1582 = vperm.xlu0 %1581, %v313
        %v1583 = vpop.permute.xlu0 %1582
        %1585 = vset.pattern.permute.xlu0 3
        %1586 = vperm.xlu0 %1585, %v314
        %v1587 = vpop.permute.xlu0 %1586
        %1589 = vset.pattern.permute.xlu0 3
        %1590 = vperm.xlu0 %1589, %v315
        %v1591 = vpop.permute.xlu0 %1590
        %1593 = vset.pattern.permute.xlu0 3
        %1594 = vperm.xlu0 %1593, %v316
        %v1595 = vpop.permute.xlu0 %1594
        %1597 = vset.pattern.permute.xlu0 3
        %1598 = vperm.xlu0 %1597, %v317
        %v1599 = vpop.permute.xlu0 %1598
        %1601 = vset.pattern.permute.xlu0 3
        %1602 = vperm.xlu0 %1601, %v318
        %v1603 = vpop.permute.xlu0 %1602
        %1605 = vset.pattern.permute.xlu0 3
        %1606 = vperm.xlu0 %1605, %v319
        %v1607 = vpop.permute.xlu0 %1606
        %1609 = vset.pattern.permute.xlu0 3
        %1610 = vperm.xlu0 %1609, %v320
        %v1611 = vpop.permute.xlu0 %1610
        %1613 = vset.pattern.permute.xlu0 3
        %1614 = vperm.xlu0 %1613, %v321
        %v1615 = vpop.permute.xlu0 %1614
        %1617 = vset.pattern.permute.xlu0 3
        %1618 = vperm.xlu0 %1617, %v322
        %v1619 = vpop.permute.xlu0 %1618
        %1621 = vset.pattern.permute.xlu0 3
        %1622 = vperm.xlu0 %1621, %v323
        %v1623 = vpop.permute.xlu0 %1622
        %1625 = vset.pattern.permute.xlu0 3
        %1626 = vperm.xlu0 %1625, %v324
        %v1627 = vpop.permute.xlu0 %1626
        %1629 = vset.pattern.permute.xlu0 3
        %1630 = vperm.xlu0 %1629, %v325
        %v1631 = vpop.permute.xlu0 %1630
        %1633 = vset.pattern.permute.xlu0 3
        %1634 = vperm.xlu0 %1633, %v326
        %v1635 = vpop.permute.xlu0 %1634
        %1637 = vset.pattern.permute.xlu0 3
        %1638 = vperm.xlu0 %1637, %v327
        %v1639 = vpop.permute.xlu0 %1638
        %1641 = vset.pattern.permute.xlu0 3
        %1642 = vperm.xlu0 %1641, %v328
        %v1643 = vpop.permute.xlu0 %1642
        %1645 = vset.pattern.permute.xlu0 3
        %1646 = vperm.xlu0 %1645, %v329
        %v1647 = vpop.permute.xlu0 %1646
        %1649 = vset.pattern.permute.xlu0 3
        %1650 = vperm.xlu0 %1649, %v330
        %v1651 = vpop.permute.xlu0 %1650
        %1653 = vset.pattern.permute.xlu0 3
        %1654 = vperm.xlu0 %1653, %v331
        %v1655 = vpop.permute.xlu0 %1654
        %1657 = vset.pattern.permute.xlu0 3
        %1658 = vperm.xlu0 %1657, %v332
        %v1659 = vpop.permute.xlu0 %1658
        %v1661 = vmul.f32 %v1503, %v1535
        %v1662 = vmul.f32 %v1504, %v1539
        %v1663 = vmul.f32 %v1505, %v1543
        %v1664 = vmul.f32 %v1506, %v1547
        %v1665 = vmul.f32 %v1507, %v1551
        %v1666 = vmul.f32 %v1508, %v1555
        %v1667 = vmul.f32 %v1509, %v1559
        %v1668 = vmul.f32 %v1510, %v1563
        %v1669 = vmul.f32 %v1511, %v1567
        %v1670 = vmul.f32 %v1512, %v1571
        %v1671 = vmul.f32 %v1513, %v1575
        %v1672 = vmul.f32 %v1514, %v1579
        %v1673 = vmul.f32 %v1515, %v1583
        %v1674 = vmul.f32 %v1516, %v1587
        %v1675 = vmul.f32 %v1517, %v1591
        %v1676 = vmul.f32 %v1518, %v1595
        %v1677 = vmul.f32 %v1519, %v1599
        %v1678 = vmul.f32 %v1520, %v1603
        %v1679 = vmul.f32 %v1521, %v1607
        %v1680 = vmul.f32 %v1522, %v1611
        %v1681 = vmul.f32 %v1523, %v1615
        %v1682 = vmul.f32 %v1524, %v1619
        %v1683 = vmul.f32 %v1525, %v1623
        %v1684 = vmul.f32 %v1526, %v1627
        %v1685 = vmul.f32 %v1527, %v1631
        %v1686 = vmul.f32 %v1528, %v1635
        %v1687 = vmul.f32 %v1529, %v1639
        %v1688 = vmul.f32 %v1530, %v1643
        %v1689 = vmul.f32 %v1531, %v1647
        %v1690 = vmul.f32 %v1532, %v1651
        %v1691 = vmul.f32 %v1501, %v1655
        %v1692 = vmul.f32 %v1502, %v1659
        %v1693 = vadd.f32 %v1338, %v1661
        %v1694 = vadd.f32 %v1339, %v1662
        %v1695 = vadd.f32 %v1340, %v1663
        %v1696 = vadd.f32 %v1341, %v1664
        %v1697 = vadd.f32 %v1342, %v1665
        %v1698 = vadd.f32 %v1343, %v1666
        %v1699 = vadd.f32 %v1344, %v1667
        %v1700 = vadd.f32 %v1345, %v1668
        %v1701 = vadd.f32 %v1346, %v1669
        %v1702 = vadd.f32 %v1347, %v1670
        %v1703 = vadd.f32 %v1348, %v1671
        %v1704 = vadd.f32 %v1349, %v1672
        %v1705 = vadd.f32 %v1350, %v1673
        %v1706 = vadd.f32 %v1351, %v1674
        %v1707 = vadd.f32 %v1352, %v1675
        %v1708 = vadd.f32 %v1353, %v1676
        %v1709 = vadd.f32 %v1354, %v1677
        %v1710 = vadd.f32 %v1355, %v1678
        %v1711 = vadd.f32 %v1356, %v1679
        %v1712 = vadd.f32 %v1357, %v1680
        %v1713 = vadd.f32 %v1358, %v1681
        %v1714 = vadd.f32 %v1359, %v1682
        %v1715 = vadd.f32 %v1360, %v1683
        %v1716 = vadd.f32 %v1361, %v1684
        %v1717 = vadd.f32 %v1362, %v1685
        %v1718 = vadd.f32 %v1363, %v1686
        %v1719 = vadd.f32 %v1364, %v1687
        %v1720 = vadd.f32 %v1365, %v1688
        %v1721 = vadd.f32 %v1366, %v1689
        %v1722 = vadd.f32 %v1367, %v1690
        %v1723 = vadd.f32 %v1368, %v1691
        %v1724 = vadd.f32 %v1369, %v1692
        %1725 = vst [vmem:[%s258] sm:$0xff] %v1693
        %1726 = vst [vmem:[%s258 + $0x8] sm:$0xff] %v1694
        %1727 = vst [vmem:[%s258 + $0x10] sm:$0xff] %v1695
        %1728 = vst [vmem:[%s258 + $0x18] sm:$0xff] %v1696
        %1729 = vst [vmem:[%s258 + $0x20] sm:$0xff] %v1697
        %1730 = vst [vmem:[%s258 + $0x28] sm:$0xff] %v1698
        %1731 = vst [vmem:[%s258 + $0x30] sm:$0xff] %v1699
        %1732 = vst [vmem:[%s258 + $0x38] sm:$0xff] %v1700
        %1733 = vst [vmem:[%s258 + $0x40] sm:$0xff] %v1701
        %1734 = vst [vmem:[%s258 + $0x48] sm:$0xff] %v1702
        %1735 = vst [vmem:[%s258 + $0x50] sm:$0xff] %v1703
        %1736 = vst [vmem:[%s258 + $0x58] sm:$0xff] %v1704
        %1737 = vst [vmem:[%s258 + $0x60] sm:$0xff] %v1705
        %1738 = vst [vmem:[%s258 + $0x68] sm:$0xff] %v1706
        %1739 = vst [vmem:[%s258 + $0x70] sm:$0xff] %v1707
        %1740 = vst [vmem:[%s258 + $0x78] sm:$0xff] %v1708
        %1741 = vst [vmem:[%s258 + $0x80] sm:$0xff] %v1709
        %1742 = vst [vmem:[%s258 + $0x88] sm:$0xff] %v1710
        %1743 = vst [vmem:[%s258 + $0x90] sm:$0xff] %v1711
        %1744 = vst [vmem:[%s258 + $0x98] sm:$0xff] %v1712
        %1745 = vst [vmem:[%s258 + $0xa0] sm:$0xff] %v1713
        %1746 = vst [vmem:[%s258 + $0xa8] sm:$0xff] %v1714
        %1747 = vst [vmem:[%s258 + $0xb0] sm:$0xff] %v1715
        %1748 = vst [vmem:[%s258 + $0xb8] sm:$0xff] %v1716
        %1749 = vst [vmem:[%s258 + $0xc0] sm:$0xff] %v1717
        %1750 = vst [vmem:[%s258 + $0xc8] sm:$0xff] %v1718
        %1751 = vst [vmem:[%s258 + $0xd0] sm:$0xff] %v1719
        %1752 = vst [vmem:[%s258 + $0xd8] sm:$0xff] %v1720
        %1753 = vst [vmem:[%s258 + $0xe0] sm:$0xff] %v1721
        %1754 = vst [vmem:[%s258 + $0xe8] sm:$0xff] %v1722
        %1755 = vst [vmem:[%s258 + $0xf0] sm:$0xff] %v1723
        %1756 = vst [vmem:[%s258 + $0xf8] sm:$0xff] %v1724
        %s1757 = sand.u32 %s144, 1
        %s1758 = scalar_lea.sflag [#allocation4], %s1757
        %s1759 = sand.u32 %s144, 1
        %s1760 = smul.addr %s1759, 256
        %s1761 = scalar_lea.vmem [#allocation5], %s1760
        // Predicated region
        $region41: #{tpu_custom_call.1} parent=35 // pred_check
          %p1762 = pneg %p154
        $region42: #{tpu_custom_call.1} parent=35 // pred_check_branch
          %1764 = sbr.rel (%p1762) target = $region44
        $region43: #{tpu_custom_call.1} parent=35 // pred_region
          %1766 = vsyncadd %s1758, 0
          %s1767 = smul.addr %s26, 32
          %s1768 = sadd.s32 %s25, %s1767
          %s1769 = smul.addr %s1768, 8
          %s1770 = scalar_lea.hbm %s4, %s1769
          %s1771 = sshll.u32 %s1761, 4
          %s1772 = int_to_ptr.vmem [resolvable:$true] %s1771
          %s1773 = sshll.u32 %s1770, 4
          %s1774 = int_to_ptr.hbm [resolvable:$true] %s1773
          %1779 = dma.vmem_to_hbm [thread:$0]  %s1772, 4096, %s1774, %s1758, 128, 128, 8
        $region44: #{tpu_custom_call.1} parent=35 // pred_fallthru
          _
      $region36: #{tpu_custom_call.1} parent=5 // pred_fallthru
        _
      %p1780 = scmp.le.s32.totalorder 2, %s16
      // Predicated region
      $region45: #{tpu_custom_call.1} parent=5 // pred_check
        %p1781 = pneg %p1780
      $region46: #{tpu_custom_call.1} parent=5 // pred_check_branch
        %1783 = sbr.rel (%p1781) target = $region48
      $region47: #{tpu_custom_call.1} parent=5 // pred_region
        %s1784 = ssub.s32 %s16, 2
        // Predicated region
        $region49: #{tpu_custom_call.1} parent=47 // pred_check
          %p1785 = pneg %p160
        $region50: #{tpu_custom_call.1} parent=47 // pred_check_branch
          %1787 = sbr.rel (%p1785) target = $region52
        $region51: #{tpu_custom_call.1} parent=47 // pred_region
          %s1788 = sand.u32 %s145, 1
          %s1789 = scalar_lea.sflag [#allocation4], %s1788
          %s1790 = sand.u32 %s145, 1
          %s1791 = smul.addr %s1790, 256
          %s1792 = scalar_lea.vmem [#allocation5], %s1791
          %1794 = dma.done %s1789, 4096
        $region52: #{tpu_custom_call.1} parent=47 // pred_fallthru
          _
      $region48: #{tpu_custom_call.1} parent=5 // pred_fallthru
        _
    $region6: #{tpu_custom_call.1} parent=1 // loop_footer
      %s20 = sadd.s32 1, %s16
    $region7: #{tpu_custom_call.1} parent=1 // loop_footer_branch
      %15 = sbr.rel target = $region3
    $region8: #{tpu_custom_call.1} parent=1 // loop_exit
      _
    %1795 = vsyncpa [#allocation3], 1
    %s1796 = scalar_lea.sflag [#allocation3], 1
    %1797 = vsyncpa %s1796, 1
    %1798 = vsyncpa [#allocation4], 1
    %s1799 = scalar_lea.sflag [#allocation4], 1
    %1800 = vsyncpa %s1799, 1

</llo_original>
